<compile_context>
chip_gen: v7x
topology: tpu7x:2x2x1
jax: 0.10.0
libtpu: 0.0.40
codegen_flags: <defaults>
</compile_context>

<pallas_src>
import functools

import jax
import jax.numpy as jnp
from jax.experimental import pallas as pl
from jax.experimental.pallas import tpu as pltpu


def _round_up(x, m):
    return ((x + m - 1) // m) * m


def _choose_tm(m):
    """Prefer large row tiles (amortize per-grid-step overhead) but keep at
    least 2 grid steps whenever possible so v7x's two TensorCores share work."""
    for tm in (512, 256, 128, 64, 32, 16, 8):
        if m >= 2 * tm:
            return tm
    return 8


# ----------------------------------------------------------------------------
# Pallas kernel: fused (matmul + bias + activation) on the MXU
# ----------------------------------------------------------------------------
def _mm_kernel(x_ref, w_ref, b_ref, o_ref, *, activation):
    acc = jnp.dot(x_ref[...], w_ref[...], preferred_element_type=jnp.float32)
    acc = acc + b_ref[...]                      # (TM, Np) + (1, Np) broadcast
    if activation == "relu":
        acc = jnp.maximum(acc, 0.0)
    elif activation == "sigmoid":
        acc = jax.nn.sigmoid(acc)
    o_ref[...] = acc.astype(o_ref.dtype)


def matmul_bias_act(x, w, b=None, activation="none", out_dtype=jnp.float32):
    """x: (M, K), w: (K, N), b: (N,) or None -> (M, N) in out_dtype.

    bf16 MXU inputs / f32 accumulation.  N is padded to a multiple of 128 so
    the output store is lane-dense (unmasked vst); the row tile is picked per
    call and K (always small here) stays fully resident in VMEM.
    """
    M, K = x.shape
    Kw, N = w.shape
    assert K == Kw
    tm = _choose_tm(M)
    m_pad = _round_up(M, tm)
    n_pad = _round_up(N, 128)

    xb = x.astype(jnp.bfloat16)
    if m_pad != M:
        xb = jnp.pad(xb, ((0, m_pad - M), (0, 0)))
    wb = w.astype(jnp.bfloat16)
    if n_pad != N:
        wb = jnp.pad(wb, ((0, 0), (0, n_pad - N)))
    if b is None:
        b2 = jnp.zeros((1, n_pad), jnp.float32)
    else:
        b2 = jnp.pad(b.astype(jnp.float32), (0, n_pad - N)).reshape(1, n_pad)

    cost = pl.CostEstimate(
        flops=2 * m_pad * K * n_pad,
        transcendentals=(m_pad * n_pad) if activation == "sigmoid" else 0,
        bytes_accessed=(m_pad * K + K * n_pad) * 2 + 4 * n_pad
        + m_pad * n_pad * jnp.dtype(out_dtype).itemsize,
    )

    out = pl.pallas_call(
        functools.partial(_mm_kernel, activation=activation),
        out_shape=jax.ShapeDtypeStruct((m_pad, n_pad), out_dtype),
        grid=(m_pad // tm,),
        in_specs=[
            pl.BlockSpec((tm, K), lambda i: (i, 0)),
            pl.BlockSpec((K, n_pad), lambda i: (0, 0)),
            pl.BlockSpec((1, n_pad), lambda i: (0, 0)),
        ],
        out_specs=pl.BlockSpec((tm, n_pad), lambda i: (i, 0)),
        compiler_params=pltpu.CompilerParams(
            dimension_semantics=("parallel",),
            vmem_limit_bytes=32 * 1024 * 1024,
        ),
        cost_estimate=cost,
    )(xb, wb, b2)

    if m_pad != M or n_pad != N:
        out = out[:M, :N]
    return out


# ----------------------------------------------------------------------------
# ConvTranspose2d:  X(B*H*W, Cin) @ W(Cin, Cout*K*K)  +  overlap-add (col2im)
# ----------------------------------------------------------------------------
def conv_transpose2d(x, w, b, stride, padding, activation):
    """x: (B, Cin, H, W); w: (Cin, Cout, K, K) (PyTorch ConvTranspose2d layout)."""
    B, Cin, H, W = x.shape
    _, Cout, K, _ = w.shape

    # Pallas matmul against the UNdilated input: lane-dense N = Cout*K*K and no
    # zero-multiply waste from stride dilation.
    xm = x.transpose(0, 2, 3, 1).reshape(B * H * W, Cin)
    wmat = w.reshape(Cin, Cout * K * K)
    cols = matmul_bias_act(xm, wmat, None, "none", out_dtype=jnp.float32)
    cols = cols.reshape(B, H, W, Cout, K, K)

    # overlap-add (col2im): y[b, i*s - p + ki, j*s - p + kj, co] += cols[b,i,j,co,ki,kj]
    Hf = (H - 1) * stride + K
    Wf = (W - 1) * stride + K
    full = jnp.zeros((B, Hf, Wf, Cout), jnp.float32)
    for ki in range(K):
        for kj in range(K):
            full = full.at[:, ki:ki + (H - 1) * stride + 1:stride,
                              kj:kj + (W - 1) * stride + 1:stride, :].add(
                cols[:, :, :, :, ki, kj])
    Hout, Wout = Hf - 2 * padding, Wf - 2 * padding
    out = full[:, padding:padding + Hout, padding:padding + Wout, :]
    out = out + b.reshape(1, 1, 1, Cout).astype(jnp.float32)
    if activation == "relu":
        out = jnp.maximum(out, 0.0)
    elif activation == "sigmoid":
        out = jax.nn.sigmoid(out)
    out = out.transpose(0, 3, 1, 2)  # NCHW
    # carry intermediate activations in bf16 (halves HBM traffic between layers)
    return out if activation == "sigmoid" else out.astype(jnp.bfloat16)


# ----------------------------------------------------------------------------
# Static layer config (kept OUT of the jitted params pytree) + parameters
# ----------------------------------------------------------------------------
def make_gen_config(dim_img):
    # TODO(synk): the exact DataGeneratorImg architecture is not given in the
    # prompt; a standard DCGAN-style 1x1 -> 64x64 transposed-conv stack is used.
    d = dim_img
    chans = (5 * d, 4 * d, 3 * d, 2 * d, d, 1)
    cfg = []
    for li in range(len(chans) - 1):
        stride, padding = (1, 0) if li == 0 else (2, 1)
        act = "sigmoid" if li == len(chans) - 2 else "relu"
        cfg.append((chans[li], chans[li + 1], 4, stride, padding, act))
    return tuple(cfg)


def init_params(key, style_dim, class_dim, dim_img, gen_cfg):
    params = {}
    key, kw, kb = jax.random.split(key, 3)
    din, dout = style_dim + class_dim, 5 * dim_img
    params["fc_w"] = jax.random.normal(kw, (din, dout), jnp.float32) / jnp.sqrt(din)
    params["fc_b"] = jax.random.normal(kb, (dout,), jnp.float32) * 0.01

    gen_w, gen_b = [], []
    for (cin, cout, k, _s, _p, _a) in gen_cfg:
        key, kw, kb = jax.random.split(key, 3)
        gen_w.append(jax.random.normal(kw, (cin, cout, k, k), jnp.float32)
                     / jnp.sqrt(cin * k * k))
        gen_b.append(jax.random.normal(kb, (cout,), jnp.float32) * 0.01)
    params["gen_w"] = gen_w
    params["gen_b"] = gen_b
    return params


# ----------------------------------------------------------------------------
# DecoderImg forward
# ----------------------------------------------------------------------------
def decoder_img_forward(params, z_style, z_content, *, gen_cfg,
                        factorized_representation=True):
    if factorized_representation:
        z = jnp.concatenate([z_style, z_content], axis=1)
        if z.ndim == 3 and z.shape[-1] == 1:        # torch .squeeze(-1) semantics
            z = jnp.squeeze(z, -1)
    else:
        z = z_content

    # feature_generator: Linear(style_dim + class_dim, 5*DIM_img), bias fused.
    feat = matmul_bias_act(z, params["fc_w"], params["fc_b"], "none")   # (B, 5*DIM)
    x = feat.reshape(feat.shape[0], feat.shape[1], 1, 1)                # NCHW

    # img_generator (DataGeneratorImg): stack of ConvTranspose2d layers.
    for (w, b, (_cin, _cout, _k, stride, padding, act)) in zip(
            params["gen_w"], params["gen_b"], gen_cfg):
        x = conv_transpose2d(x, w, b, stride, padding, act)

    return x, jnp.asarray(0.75, dtype=jnp.float32)   # torch.tensor(0.75)


# ----------------------------------------------------------------------------
if __name__ == "__main__":
    B, STYLE_DIM, CLASS_DIM, DIM_IMG = 2, 4, 8, 8
    gen_cfg = make_gen_config(DIM_IMG)

    key = jax.random.PRNGKey(0)
    key, ks, kc, kp = jax.random.split(key, 4)
    z_style = jax.random.normal(ks, (B, STYLE_DIM), jnp.float32)
    z_content = jax.random.normal(kc, (B, CLASS_DIM), jnp.float32)
    params = init_params(kp, STYLE_DIM, CLASS_DIM, DIM_IMG, gen_cfg)

    fwd = jax.jit(functools.partial(decoder_img_forward,
                                    gen_cfg=gen_cfg,
                                    factorized_representation=True))
    img_hat, const = fwd(params, z_style, z_content)
    img_hat = jax.block_until_ready(img_hat)
    const = jax.block_until_ready(const)

    assert img_hat.shape == (B, 1, 64, 64), img_hat.shape
    assert float(const) == 0.75
    assert bool(jnp.all(jnp.isfinite(img_hat)))
    print("KERNEL_OK")
</pallas_src>

<mosaic_0001>
module attributes {stable_mosaic.version = 11 : i64} {
  func.func @_mm_kernel(%arg0: i32, %arg1: memref<8x12xbf16, #tpu.memory_space<vmem>>, %arg2: memref<12x128xbf16, #tpu.memory_space<vmem>>, %arg3: memref<1x128xf32, #tpu.memory_space<vmem>>, %arg4: memref<8x128xf32, #tpu.memory_space<vmem>>) attributes {dimension_semantics = [#tpu.dimension_semantics<parallel>], iteration_bounds = array<i64: 1>, scalar_prefetch = 0 : i64, scratch_operands = 0 : i64, tpu.core_type = #tpu.core_type<tc>, window_params = [{transform_indices = @transform_0, window_bounds = array<i64: 8, 12>}, {pipeline_mode = #tpu.pipeline_mode<synchronous>, transform_indices = @transform_1, window_bounds = array<i64: 12, 128>}, {pipeline_mode = #tpu.pipeline_mode<synchronous>, transform_indices = @transform_2, window_bounds = array<i64: 1, 128>}, {transform_indices = @transform_3, window_bounds = array<i64: 8, 128>}]} {
    %c0 = arith.constant 0 : index
    %c0_0 = arith.constant 0 : index
    %0 = vector.load %arg1[%c0, %c0_0] : memref<8x12xbf16, #tpu.memory_space<vmem>>, vector<8x12xbf16>
    %c0_1 = arith.constant 0 : index
    %c0_2 = arith.constant 0 : index
    %1 = vector.load %arg2[%c0_1, %c0_2] : memref<12x128xbf16, #tpu.memory_space<vmem>>, vector<12x128xbf16>
    %cst = arith.constant dense<0.000000e+00> : vector<8x128xf32>
    %2 = tpu.matmul %0, %1, %cst {dimension_numbers = #tpu.dot_dimension_numbers<[1], [0], [0], [1], [0, 0, 1, 1], [], []>} : vector<8x12xbf16>, vector<12x128xbf16>, vector<8x128xf32> -> vector<8x128xf32>
    %c0_3 = arith.constant 0 : index
    %c0_4 = arith.constant 0 : index
    %3 = vector.load %arg3[%c0_3, %c0_4] : memref<1x128xf32, #tpu.memory_space<vmem>>, vector<1x128xf32>
    %4 = vector.broadcast %3 : vector<1x128xf32> to vector<8x128xf32>
    %5 = arith.addf %2, %4 : vector<8x128xf32>
    %c0_5 = arith.constant 0 : index
    %c0_6 = arith.constant 0 : index
    %6 = vector.load %arg4[%c0_5, %c0_6] : memref<8x128xf32, #tpu.memory_space<vmem>>, vector<8x128xf32>
    tpu.vector_store %arg4[%c0_5, %c0_6], %5 {strides = array<i32>} : memref<8x128xf32, #tpu.memory_space<vmem>>, vector<8x128xf32>,
    return
  }
  func.func @transform_0(%arg0: i32) -> (i32, i32) {
    %c0_i32 = arith.constant 0 : i32
    %c0_i32_0 = arith.constant 0 : i32
    return %arg0, %c0_i32 : i32, i32
  }
  func.func @transform_1(%arg0: i32) -> (i32, i32) {
    %c0_i32 = arith.constant 0 : i32
    %c0_i32_0 = arith.constant 0 : i32
    %c0_i32_1 = arith.constant 0 : i32
    return %c0_i32, %c0_i32_0 : i32, i32
  }
  func.func @transform_2(%arg0: i32) -> (i32, i32) {
    %c0_i32 = arith.constant 0 : i32
    %c0_i32_0 = arith.constant 0 : i32
    %c0_i32_1 = arith.constant 0 : i32
    return %c0_i32, %c0_i32_0 : i32, i32
  }
  func.func @transform_3(%arg0: i32) -> (i32, i32) {
    %c0_i32 = arith.constant 0 : i32
    %c0_i32_0 = arith.constant 0 : i32
    return %arg0, %c0_i32 : i32, i32
  }
}

module attributes {stable_mosaic.version = 11 : i64} {
  func.func @_mm_kernel(%arg0: i32, %arg1: memref<8x40xbf16, #tpu.memory_space<vmem>>, %arg2: memref<40x512xbf16, #tpu.memory_space<vmem>>, %arg3: memref<1x512xf32, #tpu.memory_space<vmem>>, %arg4: memref<8x512xf32, #tpu.memory_space<vmem>>) attributes {dimension_semantics = [#tpu.dimension_semantics<parallel>], iteration_bounds = array<i64: 1>, scalar_prefetch = 0 : i64, scratch_operands = 0 : i64, tpu.core_type = #tpu.core_type<tc>, window_params = [{transform_indices = @transform_0, window_bounds = array<i64: 8, 40>}, {pipeline_mode = #tpu.pipeline_mode<synchronous>, transform_indices = @transform_1, window_bounds = array<i64: 40, 512>}, {pipeline_mode = #tpu.pipeline_mode<synchronous>, transform_indices = @transform_2, window_bounds = array<i64: 1, 512>}, {transform_indices = @transform_3, window_bounds = array<i64: 8, 512>}]} {
    %c0 = arith.constant 0 : index
    %c0_0 = arith.constant 0 : index
    %0 = vector.load %arg1[%c0, %c0_0] : memref<8x40xbf16, #tpu.memory_space<vmem>>, vector<8x40xbf16>
    %c0_1 = arith.constant 0 : index
    %c0_2 = arith.constant 0 : index
    %1 = vector.load %arg2[%c0_1, %c0_2] : memref<40x512xbf16, #tpu.memory_space<vmem>>, vector<40x512xbf16>
    %cst = arith.constant dense<0.000000e+00> : vector<8x512xf32>
    %2 = tpu.matmul %0, %1, %cst {dimension_numbers = #tpu.dot_dimension_numbers<[1], [0], [0], [1], [0, 0, 1, 1], [], []>} : vector<8x40xbf16>, vector<40x512xbf16>, vector<8x512xf32> -> vector<8x512xf32>
    %c0_3 = arith.constant 0 : index
    %c0_4 = arith.constant 0 : index
    %3 = vector.load %arg3[%c0_3, %c0_4] : memref<1x512xf32, #tpu.memory_space<vmem>>, vector<1x512xf32>
    %4 = vector.broadcast %3 : vector<1x512xf32> to vector<8x512xf32>
    %5 = arith.addf %2, %4 : vector<8x512xf32>
    %c0_5 = arith.constant 0 : index
    %c0_6 = arith.constant 0 : index
    %6 = vector.load %arg4[%c0_5, %c0_6] : memref<8x512xf32, #tpu.memory_space<vmem>>, vector<8x512xf32>
    tpu.vector_store %arg4[%c0_5, %c0_6], %5 {strides = array<i32>} : memref<8x512xf32, #tpu.memory_space<vmem>>, vector<8x512xf32>,
    return
  }
  func.func @transform_0(%arg0: i32) -> (i32, i32) {
    %c0_i32 = arith.constant 0 : i32
    %c0_i32_0 = arith.constant 0 : i32
    return %arg0, %c0_i32 : i32, i32
  }
  func.func @transform_1(%arg0: i32) -> (i32, i32) {
    %c0_i32 = arith.constant 0 : i32
    %c0_i32_0 = arith.constant 0 : i32
    %c0_i32_1 = arith.constant 0 : i32
    return %c0_i32, %c0_i32_0 : i32, i32
  }
  func.func @transform_2(%arg0: i32) -> (i32, i32) {
    %c0_i32 = arith.constant 0 : i32
    %c0_i32_0 = arith.constant 0 : i32
    %c0_i32_1 = arith.constant 0 : i32
    return %c0_i32, %c0_i32_0 : i32, i32
  }
  func.func @transform_3(%arg0: i32) -> (i32, i32) {
    %c0_i32 = arith.constant 0 : i32
    %c0_i32_0 = arith.constant 0 : i32
    return %arg0, %c0_i32 : i32, i32
  }
}

module attributes {stable_mosaic.version = 11 : i64} {
  func.func @_mm_kernel(%arg0: i32, %arg1: memref<16x32xbf16, #tpu.memory_space<vmem>>, %arg2: memref<32x384xbf16, #tpu.memory_space<vmem>>, %arg3: memref<1x384xf32, #tpu.memory_space<vmem>>, %arg4: memref<16x384xf32, #tpu.memory_space<vmem>>) attributes {dimension_semantics = [#tpu.dimension_semantics<parallel>], iteration_bounds = array<i64: 2>, scalar_prefetch = 0 : i64, scratch_operands = 0 : i64, tpu.core_type = #tpu.core_type<tc>, window_params = [{transform_indices = @transform_0, window_bounds = array<i64: 16, 32>}, {pipeline_mode = #tpu.pipeline_mode<synchronous>, transform_indices = @transform_1, window_bounds = array<i64: 32, 384>}, {pipeline_mode = #tpu.pipeline_mode<synchronous>, transform_indices = @transform_2, window_bounds = array<i64: 1, 384>}, {transform_indices = @transform_3, window_bounds = array<i64: 16, 384>}]} {
    %c0 = arith.constant 0 : index
    %c0_0 = arith.constant 0 : index
    %0 = vector.load %arg1[%c0, %c0_0] : memref<16x32xbf16, #tpu.memory_space<vmem>>, vector<16x32xbf16>
    %c0_1 = arith.constant 0 : index
    %c0_2 = arith.constant 0 : index
    %1 = vector.load %arg2[%c0_1, %c0_2] : memref<32x384xbf16, #tpu.memory_space<vmem>>, vector<32x384xbf16>
    %cst = arith.constant dense<0.000000e+00> : vector<16x384xf32>
    %2 = tpu.matmul %0, %1, %cst {dimension_numbers = #tpu.dot_dimension_numbers<[1], [0], [0], [1], [0, 0, 1, 1], [], []>} : vector<16x32xbf16>, vector<32x384xbf16>, vector<16x384xf32> -> vector<16x384xf32>
    %c0_3 = arith.constant 0 : index
    %c0_4 = arith.constant 0 : index
    %3 = vector.load %arg3[%c0_3, %c0_4] : memref<1x384xf32, #tpu.memory_space<vmem>>, vector<1x384xf32>
    %4 = vector.broadcast %3 : vector<1x384xf32> to vector<16x384xf32>
    %5 = arith.addf %2, %4 : vector<16x384xf32>
    %c0_5 = arith.constant 0 : index
    %c0_6 = arith.constant 0 : index
    %6 = vector.load %arg4[%c0_5, %c0_6] : memref<16x384xf32, #tpu.memory_space<vmem>>, vector<16x384xf32>
    tpu.vector_store %arg4[%c0_5, %c0_6], %5 {strides = array<i32>} : memref<16x384xf32, #tpu.memory_space<vmem>>, vector<16x384xf32>,
    return
  }
  func.func @transform_0(%arg0: i32) -> (i32, i32) {
    %c0_i32 = arith.constant 0 : i32
    %c0_i32_0 = arith.constant 0 : i32
    return %arg0, %c0_i32 : i32, i32
  }
  func.func @transform_1(%arg0: i32) -> (i32, i32) {
    %c0_i32 = arith.constant 0 : i32
    %c0_i32_0 = arith.constant 0 : i32
    %c0_i32_1 = arith.constant 0 : i32
    return %c0_i32, %c0_i32_0 : i32, i32
  }
  func.func @transform_2(%arg0: i32) -> (i32, i32) {
    %c0_i32 = arith.constant 0 : i32
    %c0_i32_0 = arith.constant 0 : i32
    %c0_i32_1 = arith.constant 0 : i32
    return %c0_i32, %c0_i32_0 : i32, i32
  }
  func.func @transform_3(%arg0: i32) -> (i32, i32) {
    %c0_i32 = arith.constant 0 : i32
    %c0_i32_0 = arith.constant 0 : i32
    return %arg0, %c0_i32 : i32, i32
  }
}

module attributes {stable_mosaic.version = 11 : i64} {
  func.func @_mm_kernel(%arg0: i32, %arg1: memref<64x24xbf16, #tpu.memory_space<vmem>>, %arg2: memref<24x256xbf16, #tpu.memory_space<vmem>>, %arg3: memref<1x256xf32, #tpu.memory_space<vmem>>, %arg4: memref<64x256xf32, #tpu.memory_space<vmem>>) attributes {dimension_semantics = [#tpu.dimension_semantics<parallel>], iteration_bounds = array<i64: 2>, scalar_prefetch = 0 : i64, scratch_operands = 0 : i64, tpu.core_type = #tpu.core_type<tc>, window_params = [{transform_indices = @transform_0, window_bounds = array<i64: 64, 24>}, {pipeline_mode = #tpu.pipeline_mode<synchronous>, transform_indices = @transform_1, window_bounds = array<i64: 24, 256>}, {pipeline_mode = #tpu.pipeline_mode<synchronous>, transform_indices = @transform_2, window_bounds = array<i64: 1, 256>}, {transform_indices = @transform_3, window_bounds = array<i64: 64, 256>}]} {
    %c0 = arith.constant 0 : index
    %c0_0 = arith.constant 0 : index
    %0 = vector.load %arg1[%c0, %c0_0] : memref<64x24xbf16, #tpu.memory_space<vmem>>, vector<64x24xbf16>
    %c0_1 = arith.constant 0 : index
    %c0_2 = arith.constant 0 : index
    %1 = vector.load %arg2[%c0_1, %c0_2] : memref<24x256xbf16, #tpu.memory_space<vmem>>, vector<24x256xbf16>
    %cst = arith.constant dense<0.000000e+00> : vector<64x256xf32>
    %2 = tpu.matmul %0, %1, %cst {dimension_numbers = #tpu.dot_dimension_numbers<[1], [0], [0], [1], [0, 0, 1, 1], [], []>} : vector<64x24xbf16>, vector<24x256xbf16>, vector<64x256xf32> -> vector<64x256xf32>
    %c0_3 = arith.constant 0 : index
    %c0_4 = arith.constant 0 : index
    %3 = vector.load %arg3[%c0_3, %c0_4] : memref<1x256xf32, #tpu.memory_space<vmem>>, vector<1x256xf32>
    %4 = vector.broadcast %3 : vector<1x256xf32> to vector<64x256xf32>
    %5 = arith.addf %2, %4 : vector<64x256xf32>
    %c0_5 = arith.constant 0 : index
    %c0_6 = arith.constant 0 : index
    %6 = vector.load %arg4[%c0_5, %c0_6] : memref<64x256xf32, #tpu.memory_space<vmem>>, vector<64x256xf32>
    tpu.vector_store %arg4[%c0_5, %c0_6], %5 {strides = array<i32>} : memref<64x256xf32, #tpu.memory_space<vmem>>, vector<64x256xf32>,
    return
  }
  func.func @transform_0(%arg0: i32) -> (i32, i32) {
    %c0_i32 = arith.constant 0 : i32
    %c0_i32_0 = arith.constant 0 : i32
    return %arg0, %c0_i32 : i32, i32
  }
  func.func @transform_1(%arg0: i32) -> (i32, i32) {
    %c0_i32 = arith.constant 0 : i32
    %c0_i32_0 = arith.constant 0 : i32
    %c0_i32_1 = arith.constant 0 : i32
    return %c0_i32, %c0_i32_0 : i32, i32
  }
  func.func @transform_2(%arg0: i32) -> (i32, i32) {
    %c0_i32 = arith.constant 0 : i32
    %c0_i32_0 = arith.constant 0 : i32
    %c0_i32_1 = arith.constant 0 : i32
    return %c0_i32, %c0_i32_0 : i32, i32
  }
  func.func @transform_3(%arg0: i32) -> (i32, i32) {
    %c0_i32 = arith.constant 0 : i32
    %c0_i32_0 = arith.constant 0 : i32
    return %arg0, %c0_i32 : i32, i32
  }
}

module attributes {stable_mosaic.version = 11 : i64} {
  func.func @_mm_kernel(%arg0: i32, %arg1: memref<256x16xbf16, #tpu.memory_space<vmem>>, %arg2: memref<16x128xbf16, #tpu.memory_space<vmem>>, %arg3: memref<1x128xf32, #tpu.memory_space<vmem>>, %arg4: memref<256x128xf32, #tpu.memory_space<vmem>>) attributes {dimension_semantics = [#tpu.dimension_semantics<parallel>], iteration_bounds = array<i64: 2>, scalar_prefetch = 0 : i64, scratch_operands = 0 : i64, tpu.core_type = #tpu.core_type<tc>, window_params = [{transform_indices = @transform_0, window_bounds = array<i64: 256, 16>}, {pipeline_mode = #tpu.pipeline_mode<synchronous>, transform_indices = @transform_1, window_bounds = array<i64: 16, 128>}, {pipeline_mode = #tpu.pipeline_mode<synchronous>, transform_indices = @transform_2, window_bounds = array<i64: 1, 128>}, {transform_indices = @transform_3, window_bounds = array<i64: 256, 128>}]} {
    %c0 = arith.constant 0 : index
    %c0_0 = arith.constant 0 : index
    %0 = vector.load %arg1[%c0, %c0_0] : memref<256x16xbf16, #tpu.memory_space<vmem>>, vector<256x16xbf16>
    %c0_1 = arith.constant 0 : index
    %c0_2 = arith.constant 0 : index
    %1 = vector.load %arg2[%c0_1, %c0_2] : memref<16x128xbf16, #tpu.memory_space<vmem>>, vector<16x128xbf16>
    %cst = arith.constant dense<0.000000e+00> : vector<256x128xf32>
    %2 = tpu.matmul %0, %1, %cst {dimension_numbers = #tpu.dot_dimension_numbers<[1], [0], [0], [1], [0, 0, 1, 1], [], []>} : vector<256x16xbf16>, vector<16x128xbf16>, vector<256x128xf32> -> vector<256x128xf32>
    %c0_3 = arith.constant 0 : index
    %c0_4 = arith.constant 0 : index
    %3 = vector.load %arg3[%c0_3, %c0_4] : memref<1x128xf32, #tpu.memory_space<vmem>>, vector<1x128xf32>
    %4 = vector.broadcast %3 : vector<1x128xf32> to vector<256x128xf32>
    %5 = arith.addf %2, %4 : vector<256x128xf32>
    %c0_5 = arith.constant 0 : index
    %c0_6 = arith.constant 0 : index
    %6 = vector.load %arg4[%c0_5, %c0_6] : memref<256x128xf32, #tpu.memory_space<vmem>>, vector<256x128xf32>
    tpu.vector_store %arg4[%c0_5, %c0_6], %5 {strides = array<i32>} : memref<256x128xf32, #tpu.memory_space<vmem>>, vector<256x128xf32>,
    return
  }
  func.func @transform_0(%arg0: i32) -> (i32, i32) {
    %c0_i32 = arith.constant 0 : i32
    %c0_i32_0 = arith.constant 0 : i32
    return %arg0, %c0_i32 : i32, i32
  }
  func.func @transform_1(%arg0: i32) -> (i32, i32) {
    %c0_i32 = arith.constant 0 : i32
    %c0_i32_0 = arith.constant 0 : i32
    %c0_i32_1 = arith.constant 0 : i32
    return %c0_i32, %c0_i32_0 : i32, i32
  }
  func.func @transform_2(%arg0: i32) -> (i32, i32) {
    %c0_i32 = arith.constant 0 : i32
    %c0_i32_0 = arith.constant 0 : i32
    %c0_i32_1 = arith.constant 0 : i32
    return %c0_i32, %c0_i32_0 : i32, i32
  }
  func.func @transform_3(%arg0: i32) -> (i32, i32) {
    %c0_i32 = arith.constant 0 : i32
    %c0_i32_0 = arith.constant 0 : i32
    return %arg0, %c0_i32 : i32, i32
  }
}

module attributes {stable_mosaic.version = 11 : i64} {
  func.func @_mm_kernel(%arg0: i32, %arg1: memref<512x8xbf16, #tpu.memory_space<vmem>>, %arg2: memref<8x128xbf16, #tpu.memory_space<vmem>>, %arg3: memref<1x128xf32, #tpu.memory_space<vmem>>, %arg4: memref<512x128xf32, #tpu.memory_space<vmem>>) attributes {dimension_semantics = [#tpu.dimension_semantics<parallel>], iteration_bounds = array<i64: 4>, scalar_prefetch = 0 : i64, scratch_operands = 0 : i64, tpu.core_type = #tpu.core_type<tc>, window_params = [{transform_indices = @transform_0, window_bounds = array<i64: 512, 8>}, {pipeline_mode = #tpu.pipeline_mode<synchronous>, transform_indices = @transform_1, window_bounds = array<i64: 8, 128>}, {pipeline_mode = #tpu.pipeline_mode<synchronous>, transform_indices = @transform_2, window_bounds = array<i64: 1, 128>}, {transform_indices = @transform_3, window_bounds = array<i64: 512, 128>}]} {
    %c0 = arith.constant 0 : index
    %c0_0 = arith.constant 0 : index
    %0 = vector.load %arg1[%c0, %c0_0] : memref<512x8xbf16, #tpu.memory_space<vmem>>, vector<512x8xbf16>
    %c0_1 = arith.constant 0 : index
    %c0_2 = arith.constant 0 : index
    %1 = vector.load %arg2[%c0_1, %c0_2] : memref<8x128xbf16, #tpu.memory_space<vmem>>, vector<8x128xbf16>
    %cst = arith.constant dense<0.000000e+00> : vector<512x128xf32>
    %2 = tpu.matmul %0, %1, %cst {dimension_numbers = #tpu.dot_dimension_numbers<[1], [0], [0], [1], [0, 0, 1, 1], [], []>} : vector<512x8xbf16>, vector<8x128xbf16>, vector<512x128xf32> -> vector<512x128xf32>
    %c0_3 = arith.constant 0 : index
    %c0_4 = arith.constant 0 : index
    %3 = vector.load %arg3[%c0_3, %c0_4] : memref<1x128xf32, #tpu.memory_space<vmem>>, vector<1x128xf32>
    %4 = vector.broadcast %3 : vector<1x128xf32> to vector<512x128xf32>
    %5 = arith.addf %2, %4 : vector<512x128xf32>
    %c0_5 = arith.constant 0 : index
    %c0_6 = arith.constant 0 : index
    %6 = vector.load %arg4[%c0_5, %c0_6] : memref<512x128xf32, #tpu.memory_space<vmem>>, vector<512x128xf32>
    tpu.vector_store %arg4[%c0_5, %c0_6], %5 {strides = array<i32>} : memref<512x128xf32, #tpu.memory_space<vmem>>, vector<512x128xf32>,
    return
  }
  func.func @transform_0(%arg0: i32) -> (i32, i32) {
    %c0_i32 = arith.constant 0 : i32
    %c0_i32_0 = arith.constant 0 : i32
    return %arg0, %c0_i32 : i32, i32
  }
  func.func @transform_1(%arg0: i32) -> (i32, i32) {
    %c0_i32 = arith.constant 0 : i32
    %c0_i32_0 = arith.constant 0 : i32
    %c0_i32_1 = arith.constant 0 : i32
    return %c0_i32, %c0_i32_0 : i32, i32
  }
  func.func @transform_2(%arg0: i32) -> (i32, i32) {
    %c0_i32 = arith.constant 0 : i32
    %c0_i32_0 = arith.constant 0 : i32
    %c0_i32_1 = arith.constant 0 : i32
    return %c0_i32, %c0_i32_0 : i32, i32
  }
  func.func @transform_3(%arg0: i32) -> (i32, i32) {
    %c0_i32 = arith.constant 0 : i32
    %c0_i32_0 = arith.constant 0 : i32
    return %arg0, %c0_i32 : i32, i32
  }
}

</mosaic_0001>

<llo_original>
// kernel: decoder_img_forward.7
$region0: #{decoder_img_forward.7}
  #allocation0 [shape = 'u32[]', space=smem, size = 0x4, offset = 0x4, fixed_abs, tag = 'smem constant byte address 0x4 - core index']
  #allocation1 [shape = 'u32[144,128]{1,0:T(1,128)}', space=vmem, size = 0x12000, scoped, tag = 'internal scratch']
  %s0 = inlined_call_operand.vmem [shape: bf16[8,40], index: 0, kind: input, shape index: {}]
  %s1 = inlined_call_operand.vmem [shape: bf16[40,512], index: 1, kind: input, shape index: {}]
  %s2 = inlined_call_operand.vmem [shape: f32[1,512], index: 2, kind: input, shape index: {}]
  %s3 = inlined_call_operand.vmem [shape: f32[8,512], index: 3, kind: output, shape index: {}]
  %s4 = sld [smem:[#allocation0]]
  $region22: #{decoder_img_forward.7} parent=0
    _
  %s6 = ssub.s32 1, %s4
  %s7 = scalar_select 0, %s6, %s4
  // Predicated region
  $region2: #{decoder_img_forward.7} parent=0 // pred_check
    _
  $region3: #{decoder_img_forward.7} parent=0 // pred_check_branch
    %9 = sbr.rel (0) target = $region5
  $region4: #{decoder_img_forward.7} parent=0 // pred_region
    _
  $region5: #{decoder_img_forward.7} parent=0 // pred_fallthru
    _
  // Predicated region
  $region6: #{decoder_img_forward.7} parent=0 // pred_check
    _
  $region7: #{decoder_img_forward.7} parent=0 // pred_check_branch
    %11 = sbr.rel (0) target = $region9
  $region8: #{decoder_img_forward.7} parent=0 // pred_region
    _
  $region9: #{decoder_img_forward.7} parent=0 // pred_fallthru
    _
  // Predicated region
  $region10: #{decoder_img_forward.7} parent=0 // pred_check
    _
  $region11: #{decoder_img_forward.7} parent=0 // pred_check_branch
    %13 = sbr.rel (0) target = $region13
  $region12: #{decoder_img_forward.7} parent=0 // pred_region
    _
  $region13: #{decoder_img_forward.7} parent=0 // pred_fallthru
    _
  %v15 = vld [vmem:[%s0] sm:$0xf]
  %v16 = vld [vmem:[%s1] sm:$0xff]
  %v17 = vld [vmem:[%s1 + $0x8] sm:$0xff]
  %v18 = vld [vmem:[%s1 + $0x10] sm:$0xff]
  %v19 = vld [vmem:[%s1 + $0x18] sm:$0xff]
  %v20 = vld [vmem:[%s1 + $0x20] sm:$0xff]
  %v21 = vld [vmem:[%s1 + $0x28] sm:$0xff]
  %v22 = vld [vmem:[%s1 + $0x30] sm:$0xff]
  %v23 = vld [vmem:[%s1 + $0x38] sm:$0xff]
  %v24 = vld [vmem:[%s1 + $0x40] sm:$0xff]
  %v25 = vld [vmem:[%s1 + $0x48] sm:$0xff]
  %v26 = vld [vmem:[%s2] sm:$0xf]
  %v28 = vlaneseq
  %v29 = vshrl.u32 %v28, 7
  %v30 = vsub.s32 0, %v29
  %v31 = vrot.slane %v26, %v30
  %v32 = vlaneseq
  %v33 = vshrl.u32 %v32, 7
  %v34 = vsub.s32 1, %v33
  %v35 = vrot.slane %v26, %v34
  %v36 = vlaneseq
  %v37 = vshrl.u32 %v36, 7
  %v38 = vsub.s32 2, %v37
  %v39 = vrot.slane %v26, %v38
  %v40 = vlaneseq
  %v41 = vshrl.u32 %v40, 7
  %v42 = vsub.s32 3, %v41
  %v43 = vrot.slane %v26, %v42
  %v58 = vunpack.c.l.b16 %v16
  %v59 = vunpack.c.h.b16 %v16
  %v60 = vunpack.c.l.b16 %v17
  %v61 = vunpack.c.h.b16 %v17
  %v62 = vunpack.c.l.b16 %v18
  %v63 = vunpack.c.h.b16 %v18
  %v64 = vunpack.c.l.b16 %v19
  %v65 = vunpack.c.h.b16 %v19
  %v66 = vunpack.c.l.b16 %v20
  %v67 = vunpack.c.h.b16 %v20
  %v68 = vunpack.c.l.b16 %v21
  %v69 = vunpack.c.h.b16 %v21
  %v70 = vunpack.c.l.b16 %v22
  %v71 = vunpack.c.h.b16 %v22
  %v72 = vunpack.c.l.b16 %v23
  %v73 = vunpack.c.h.b16 %v23
  %v74 = vunpack.c.l.b16 %v24
  %v75 = vunpack.c.h.b16 %v24
  %v76 = vunpack.c.l.b16 %v25
  %v77 = vunpack.c.h.b16 %v25
  %v78 = vpack.c.b16 %v62, %v58
  %v79 = vpack.c.b16 %v63, %v59
  %v80 = vpack.c.b16 %v64, %v60
  %v81 = vpack.c.b16 %v65, %v61
  %v82 = vpack.c.b16 %v70, %v66
  %v83 = vpack.c.b16 %v71, %v67
  %v84 = vpack.c.b16 %v72, %v68
  %v85 = vpack.c.b16 %v73, %v69
  %v86 = vpack.c.b16 %v74, %v74
  %v87 = vpack.c.b16 %v75, %v75
  %v88 = vpack.c.b16 %v76, %v76
  %v89 = vpack.c.b16 %v77, %v77
  %vm98 = vcmask 326656
  %v100 = vsel %vm98, %v15, 0
  %vm102 = vcmask 1043456
  %v104 = vsel %vm102, %v86, 0
  %v107 = vsel %vm102, %v87, 0
  %v110 = vsel %vm102, %v88, 0
  %v113 = vsel %vm102, %v89, 0
  %115 = vmatprep.subr.bf16.mxu0 %v79
  %116 = vmatpush1.bf16.msra.mxu0 %v78
  %117 = vmatprep.subr.bf16.mxu0 %v83
  %118 = vmatpush1.bf16.msra.mxu0 %v82
  %119 = vmatprep.subr.bf16.mxu0 %v107
  %120 = vmatpush1.bf16.msra.mxu0 %v104
  %121 = vmatprep.subr.bf16.mxu0 0
  %122 = vmatpush1.bf16.msra.mxu0 0
  %123 = vmatprep.subr.bf16.mxu0 0
  %124 = vmatpush1.bf16.msra.mxu0 0
  %125 = vmatprep.subr.bf16.mxu0 0
  %126 = vmatpush1.bf16.msra.mxu0 0
  %127 = vmatprep.subr.bf16.mxu0 0
  %128 = vmatpush1.bf16.msra.mxu0 0
  %129 = vmatprep.subr.bf16.mxu0 0
  %130 = vmatpush1.bf16.msra.mxu0 0
  %131 = vmatprep.subr.bf16.mxu0 0
  %132 = vmatpush1.bf16.msra.mxu0 0
  %133 = vmatprep.subr.bf16.mxu0 0
  %134 = vmatpush1.bf16.msra.mxu0 0
  %135 = vmatprep.subr.bf16.mxu0 0
  %136 = vmatpush1.bf16.msra.mxu0 0
  %137 = vmatprep.subr.bf16.mxu0 0
  %138 = vmatpush1.bf16.msra.mxu0 0
  %139 = vmatprep.subr.bf16.mxu0 0
  %140 = vmatpush1.bf16.msra.mxu0 0
  %141 = vmatprep.subr.bf16.mxu0 0
  %142 = vmatpush1.bf16.msra.mxu0 0
  %143 = vmatprep.subr.bf16.mxu0 0
  %144 = vmatpush1.bf16.msra.mxu0 0
  %145 = vmatprep.subr.bf16.mxu0 0
  %146 = vmatpush1.bf16.msra.mxu0 0
  %147 = vmatprep.mubr.bf16.mxu0 0
  %148 = vmatmul.mubr.bf16.gmra.mrb[0].mxu0 %v100
  %v149 = vpop.f32.mrb[0].mxu0
  %v150 = vadd.f32 %v31, %v149
  %v151 = vpop.f32.mrb[0].mxu0
  %v152 = vadd.f32 %v35, %v151
  %v153 = vpop.f32.mrb[0].mxu0
  %v154 = vpop.f32.mrb[0].mxu0
  %155 = vdwg.mxu0
  %156 = vmatprep.subr.bf16.mxu0 %v81
  %157 = vmatpush1.bf16.msra.mxu0 %v80
  %158 = vmatprep.subr.bf16.mxu0 %v85
  %159 = vmatpush1.bf16.msra.mxu0 %v84
  %160 = vmatprep.subr.bf16.mxu0 %v113
  %161 = vmatpush1.bf16.msra.mxu0 %v110
  %162 = vmatprep.subr.bf16.mxu0 0
  %163 = vmatpush1.bf16.msra.mxu0 0
  %164 = vmatprep.subr.bf16.mxu0 0
  %165 = vmatpush1.bf16.msra.mxu0 0
  %166 = vmatprep.subr.bf16.mxu0 0
  %167 = vmatpush1.bf16.msra.mxu0 0
  %168 = vmatprep.subr.bf16.mxu0 0
  %169 = vmatpush1.bf16.msra.mxu0 0
  %170 = vmatprep.subr.bf16.mxu0 0
  %171 = vmatpush1.bf16.msra.mxu0 0
  %172 = vmatprep.subr.bf16.mxu0 0
  %173 = vmatpush1.bf16.msra.mxu0 0
  %174 = vmatprep.subr.bf16.mxu0 0
  %175 = vmatpush1.bf16.msra.mxu0 0
  %176 = vmatprep.subr.bf16.mxu0 0
  %177 = vmatpush1.bf16.msra.mxu0 0
  %178 = vmatprep.subr.bf16.mxu0 0
  %179 = vmatpush1.bf16.msra.mxu0 0
  %180 = vmatprep.subr.bf16.mxu0 0
  %181 = vmatpush1.bf16.msra.mxu0 0
  %182 = vmatprep.subr.bf16.mxu0 0
  %183 = vmatpush1.bf16.msra.mxu0 0
  %184 = vmatprep.subr.bf16.mxu0 0
  %185 = vmatpush1.bf16.msra.mxu0 0
  %186 = vmatprep.subr.bf16.mxu0 0
  %187 = vmatpush1.bf16.msra.mxu0 0
  %188 = vmatprep.mubr.bf16.mxu0 0
  %189 = vmatmul.mubr.bf16.gmra.mrb[0].mxu0 %v100
  %v190 = vpop.f32.mrb[0].mxu0
  %v191 = vadd.f32 %v39, %v190
  %v192 = vpop.f32.mrb[0].mxu0
  %v193 = vadd.f32 %v43, %v192
  %v194 = vpop.f32.mrb[0].mxu0
  %v195 = vpop.f32.mrb[0].mxu0
  %196 = vdwg.mxu0
  %197 = vst [vmem:[%s3] sm:$0xff] %v150
  %198 = vst [vmem:[%s3 + $0x8] sm:$0xff] %v152
  %199 = vst [vmem:[%s3 + $0x10] sm:$0xff] %v191
  %200 = vst [vmem:[%s3 + $0x18] sm:$0xff] %v193
  // Predicated region
  $region14: #{decoder_img_forward.7} parent=0 // pred_check
    _
  $region15: #{decoder_img_forward.7} parent=0 // pred_check_branch
    %202 = sbr.rel (0) target = $region17
  $region16: #{decoder_img_forward.7} parent=0 // pred_region
    _
  $region17: #{decoder_img_forward.7} parent=0 // pred_fallthru
    _
  // Predicated region
  $region18: #{decoder_img_forward.7} parent=0 // pred_check
    _
  $region19: #{decoder_img_forward.7} parent=0 // pred_check_branch
    %204 = sbr.rel (0) target = $region21
  $region20: #{decoder_img_forward.7} parent=0 // pred_region
    _
  $region21: #{decoder_img_forward.7} parent=0 // pred_fallthru
    _

// kernel: decoder_img_forward.6
$region0: #{decoder_img_forward.6}
  #allocation0 [shape = 'u32[]', space=smem, size = 0x4, offset = 0x4, fixed_abs, tag = 'smem constant byte address 0x4 - core index']
  #allocation1 [shape = 'u32[144,128]{1,0:T(1,128)}', space=vmem, size = 0x12000, scoped, tag = 'internal scratch']
  %s0 = inlined_call_operand.vmem [shape: bf16[8,12], index: 0, kind: input, shape index: {}]
  %s1 = inlined_call_operand.vmem [shape: bf16[12,128], index: 1, kind: input, shape index: {}]
  %s2 = inlined_call_operand.vmem [shape: f32[1,128], index: 2, kind: input, shape index: {}]
  %s3 = inlined_call_operand.vmem [shape: f32[8,128], index: 3, kind: output, shape index: {}]
  %s4 = sld [smem:[#allocation0]]
  $region22: #{decoder_img_forward.6} parent=0
    _
  %s6 = ssub.s32 1, %s4
  %s7 = scalar_select 0, %s6, %s4
  // Predicated region
  $region2: #{decoder_img_forward.6} parent=0 // pred_check
    _
  $region3: #{decoder_img_forward.6} parent=0 // pred_check_branch
    %9 = sbr.rel (0) target = $region5
  $region4: #{decoder_img_forward.6} parent=0 // pred_region
    _
  $region5: #{decoder_img_forward.6} parent=0 // pred_fallthru
    _
  // Predicated region
  $region6: #{decoder_img_forward.6} parent=0 // pred_check
    _
  $region7: #{decoder_img_forward.6} parent=0 // pred_check_branch
    %11 = sbr.rel (0) target = $region9
  $region8: #{decoder_img_forward.6} parent=0 // pred_region
    _
  $region9: #{decoder_img_forward.6} parent=0 // pred_fallthru
    _
  // Predicated region
  $region10: #{decoder_img_forward.6} parent=0 // pred_check
    _
  $region11: #{decoder_img_forward.6} parent=0 // pred_check_branch
    %13 = sbr.rel (0) target = $region13
  $region12: #{decoder_img_forward.6} parent=0 // pred_region
    _
  $region13: #{decoder_img_forward.6} parent=0 // pred_fallthru
    _
  %v15 = vld [vmem:[%s0] sm:$0xf]
  %v16 = vld [vmem:[%s1] sm:$0xf]
  %v17 = vld [vmem:[%s1 + $0x4] sm:$0x3]
  %v18 = vld [vmem:[%s2] sm:$0x1]
  %v20 = vlaneseq
  %v21 = vshrl.u32 %v20, 7
  %v22 = vsub.s32 0, %v21
  %v23 = vrot.slane %v18, %v22
  %v27 = vunpack.c.l.b16 %v16
  %v28 = vunpack.c.l.b16 %v17
  %v29 = vpack.c.b16 %v28, %v27
  %vm30 = vcmask 97280
  %v32 = vsel %vm30, %v15, 0
  %vm34 = vcmask 1045504
  %v36 = vsel %vm34, %v29, 0
  %38 = vmatprep.subr.bf16.mxu0 0
  %39 = vmatpush1.bf16.msra.mxu0 %v36
  %40 = vmatprep.subr.bf16.mxu0 0
  %41 = vmatpush1.bf16.msra.mxu0 0
  %42 = vmatprep.subr.bf16.mxu0 0
  %43 = vmatpush1.bf16.msra.mxu0 0
  %44 = vmatprep.subr.bf16.mxu0 0
  %45 = vmatpush1.bf16.msra.mxu0 0
  %46 = vmatprep.subr.bf16.mxu0 0
  %47 = vmatpush1.bf16.msra.mxu0 0
  %48 = vmatprep.subr.bf16.mxu0 0
  %49 = vmatpush1.bf16.msra.mxu0 0
  %50 = vmatprep.subr.bf16.mxu0 0
  %51 = vmatpush1.bf16.msra.mxu0 0
  %52 = vmatprep.subr.bf16.mxu0 0
  %53 = vmatpush1.bf16.msra.mxu0 0
  %54 = vmatprep.subr.bf16.mxu0 0
  %55 = vmatpush1.bf16.msra.mxu0 0
  %56 = vmatprep.subr.bf16.mxu0 0
  %57 = vmatpush1.bf16.msra.mxu0 0
  %58 = vmatprep.subr.bf16.mxu0 0
  %59 = vmatpush1.bf16.msra.mxu0 0
  %60 = vmatprep.subr.bf16.mxu0 0
  %61 = vmatpush1.bf16.msra.mxu0 0
  %62 = vmatprep.subr.bf16.mxu0 0
  %63 = vmatpush1.bf16.msra.mxu0 0
  %64 = vmatprep.subr.bf16.mxu0 0
  %65 = vmatpush1.bf16.msra.mxu0 0
  %66 = vmatprep.subr.bf16.mxu0 0
  %67 = vmatpush1.bf16.msra.mxu0 0
  %68 = vmatprep.subr.bf16.mxu0 0
  %69 = vmatpush1.bf16.msra.mxu0 0
  %70 = vmatprep.mubr.bf16.mxu0 0
  %71 = vmatmul.mubr.bf16.gmra.mrb[0].mxu0 %v32
  %v72 = vpop.f32.mrb[0].mxu0
  %v73 = vadd.f32 %v23, %v72
  %v74 = vpop.f32.mrb[0].mxu0
  %v75 = vpop.f32.mrb[0].mxu0
  %v76 = vpop.f32.mrb[0].mxu0
  %77 = vdwg.mxu0
  %78 = vst [vmem:[%s3] sm:$0xff] %v73
  // Predicated region
  $region14: #{decoder_img_forward.6} parent=0 // pred_check
    _
  $region15: #{decoder_img_forward.6} parent=0 // pred_check_branch
    %80 = sbr.rel (0) target = $region17
  $region16: #{decoder_img_forward.6} parent=0 // pred_region
    _
  $region17: #{decoder_img_forward.6} parent=0 // pred_fallthru
    _
  // Predicated region
  $region18: #{decoder_img_forward.6} parent=0 // pred_check
    _
  $region19: #{decoder_img_forward.6} parent=0 // pred_check_branch
    %82 = sbr.rel (0) target = $region21
  $region20: #{decoder_img_forward.6} parent=0 // pred_region
    _
  $region21: #{decoder_img_forward.6} parent=0 // pred_fallthru
    _

// kernel: decoder_img_forward.8
$region0: #{decoder_img_forward.8}
  #allocation0 [shape = 'u32[]', space=smem, size = 0x4, offset = 0x4, fixed_abs, tag = 'smem constant byte address 0x4 - core index']
  #allocation1 [shape = 'u32[144,128]{1,0:T(1,128)}', space=vmem, size = 0x12000, scoped, tag = 'internal scratch']
  %s0 = inlined_call_operand.vmem [shape: bf16[32,32], index: 0, kind: input, shape index: {}]
  %s1 = inlined_call_operand.vmem [shape: bf16[32,384], index: 1, kind: input, shape index: {}]
  %s2 = inlined_call_operand.vmem [shape: f32[1,384], index: 2, kind: input, shape index: {}]
  %s3 = inlined_call_operand.vmem [shape: f32[32,384], index: 3, kind: output, shape index: {}]
  %s4 = sld [smem:[#allocation0]]
  $region45: #{decoder_img_forward.8} parent=0
    _
  %s6 = ssub.s32 1, %s4
  %s7 = scalar_select 0, %s6, %s4
  loop: start=0, step=1, limit=4
  $region2: #{decoder_img_forward.8} parent=0 // loop_pre_header
    _
  $region3: #{decoder_img_forward.8} parent=0 // loop_header
    %s9 = sphi 0, %s13
    %p10 = scmp.ge.s32.totalorder %s9, 4
    %s19 = sphi 0, %s21
    %s22 = sphi 0, %s19
    %s23 = sphi 0, %s22
    %s39 = sphi 0, %s23
    %s43 = sphi 0, %s43
    %s45 = sphi 0, %s43
    %s46 = sphi 0, %s45
    %s60 = sphi 0, %s46
    %s64 = sphi 0, %s64
    %s66 = sphi 0, %s64
    %s67 = sphi 0, %s66
    %s81 = sphi 0, %s67
    %s87 = sphi 0, %s89
    %s90 = sphi 0, %s87
    %s91 = sphi 0, %s90
    %s107 = sphi 0, %s91
  $region4: #{decoder_img_forward.8} parent=0 // loop_header_branch
    %12 = sbr.rel (%p10) target = $region8
  $region5: #{decoder_img_forward.8} parent=0 // loop_body
    %s14 = ssub.s32 %s9, 1
    %s15 = ssub.s32 %s9, 2
    %s16 = sadd.s32 %s9, 1
    %s17 = ssub.s32 %s9, %s16
    %p18 = scmp.eq.s32.totalorder %s17, 0
    %s20 = sadd.s32 %s19, 1
    %s21 = scalar_select %p18, %s19, %s20
    %p24 = pneg %p18
    %p25 = scmp.eq.s32.totalorder %s9, 1
    %p26 = por %p24, %p25
    %p27 = scmp.ne.s32.totalorder %s19, %s22
    %p28 = scmp.eq.s32.totalorder %s9, 0
    %p29 = por %p27, %p28
    %p30 = scmp.ne.s32.totalorder %s19, %s22
    %p31 = scmp.eq.s32.totalorder %s14, 1
    %p32 = por %p30, %p31
    %p33 = scmp.ne.s32.totalorder %s22, %s23
    %p34 = scmp.eq.s32.totalorder %s14, 0
    %p35 = por %p33, %p34
    %p36 = scmp.ne.s32.totalorder %s22, %s23
    %p37 = scmp.eq.s32.totalorder %s15, 1
    %p38 = por %p36, %p37
    %p40 = scmp.ne.s32.totalorder %s23, %s39
    %p41 = scmp.eq.s32.totalorder %s15, 0
    %p42 = por %p40, %p41
    %s44 = sadd.s32 %s43, 1
    %p47 = scmp.eq.s32.totalorder %s9, 1
    %p48 = scmp.ne.s32.totalorder %s43, %s45
    %p49 = scmp.eq.s32.totalorder %s9, 0
    %p50 = por %p48, %p49
    %p51 = scmp.ne.s32.totalorder %s43, %s45
    %p52 = scmp.eq.s32.totalorder %s14, 1
    %p53 = por %p51, %p52
    %p54 = scmp.ne.s32.totalorder %s45, %s46
    %p55 = scmp.eq.s32.totalorder %s14, 0
    %p56 = por %p54, %p55
    %p57 = scmp.ne.s32.totalorder %s45, %s46
    %p58 = scmp.eq.s32.totalorder %s15, 1
    %p59 = por %p57, %p58
    %p61 = scmp.ne.s32.totalorder %s46, %s60
    %p62 = scmp.eq.s32.totalorder %s15, 0
    %p63 = por %p61, %p62
    %s65 = sadd.s32 %s64, 1
    %p68 = scmp.eq.s32.totalorder %s9, 1
    %p69 = scmp.ne.s32.totalorder %s64, %s66
    %p70 = scmp.eq.s32.totalorder %s9, 0
    %p71 = por %p69, %p70
    %p72 = scmp.ne.s32.totalorder %s64, %s66
    %p73 = scmp.eq.s32.totalorder %s14, 1
    %p74 = por %p72, %p73
    %p75 = scmp.ne.s32.totalorder %s66, %s67
    %p76 = scmp.eq.s32.totalorder %s14, 0
    %p77 = por %p75, %p76
    %p78 = scmp.ne.s32.totalorder %s66, %s67
    %p79 = scmp.eq.s32.totalorder %s15, 1
    %p80 = por %p78, %p79
    %p82 = scmp.ne.s32.totalorder %s67, %s81
    %p83 = scmp.eq.s32.totalorder %s15, 0
    %p84 = por %p82, %p83
    %s85 = ssub.s32 %s9, %s16
    %p86 = scmp.eq.s32.totalorder %s85, 0
    %s88 = sadd.s32 %s87, 1
    %s89 = scalar_select %p86, %s87, %s88
    %p92 = pneg %p86
    %p93 = scmp.eq.s32.totalorder %s9, 1
    %p94 = por %p92, %p93
    %p95 = scmp.ne.s32.totalorder %s87, %s90
    %p96 = scmp.eq.s32.totalorder %s9, 0
    %p97 = por %p95, %p96
    %p98 = scmp.ne.s32.totalorder %s87, %s90
    %p99 = scmp.eq.s32.totalorder %s14, 1
    %p100 = por %p98, %p99
    %p101 = scmp.ne.s32.totalorder %s90, %s91
    %p102 = scmp.eq.s32.totalorder %s14, 0
    %p103 = por %p101, %p102
    %p104 = scmp.ne.s32.totalorder %s90, %s91
    %p105 = scmp.eq.s32.totalorder %s15, 1
    %p106 = por %p104, %p105
    %p108 = scmp.ne.s32.totalorder %s91, %s107
    %p109 = scmp.eq.s32.totalorder %s15, 0
    %p110 = por %p108, %p109
    %p111 = scmp.le.s32.totalorder 1, %s9
    %p112 = scmp.lt.s32.totalorder %s9, 3
    %p113 = pnand %p111, %p112
    %p114 = pneg %p113
    // Predicated region
    $region9: #{decoder_img_forward.8} parent=5 // pred_check
      _
    $region10: #{decoder_img_forward.8} parent=5 // pred_check_branch
      %116 = sbr.rel (%p113) target = $region12
    $region11: #{decoder_img_forward.8} parent=5 // pred_region
      %s117 = ssub.s32 %s9, 1
      // Predicated region
      $region13: #{decoder_img_forward.8} parent=11 // pred_check
        %p118 = pneg %p56
      $region14: #{decoder_img_forward.8} parent=11 // pred_check_branch
        %120 = sbr.rel (%p118) target = $region16
      $region15: #{decoder_img_forward.8} parent=11 // pred_region
        _
      $region16: #{decoder_img_forward.8} parent=11 // pred_fallthru
        _
      // Predicated region
      $region17: #{decoder_img_forward.8} parent=11 // pred_check
        %p121 = pneg %p77
      $region18: #{decoder_img_forward.8} parent=11 // pred_check_branch
        %123 = sbr.rel (%p121) target = $region20
      $region19: #{decoder_img_forward.8} parent=11 // pred_region
        _
      $region20: #{decoder_img_forward.8} parent=11 // pred_fallthru
        _
    $region12: #{decoder_img_forward.8} parent=5 // pred_fallthru
      _
    %p124 = scmp.lt.s32.totalorder %s9, 2
    // Predicated region
    $region21: #{decoder_img_forward.8} parent=5 // pred_check
      %p125 = pneg %p124
    $region22: #{decoder_img_forward.8} parent=5 // pred_check_branch
      %127 = sbr.rel (%p125) target = $region24
    $region23: #{decoder_img_forward.8} parent=5 // pred_region
      // Predicated region
      $region25: #{decoder_img_forward.8} parent=23 // pred_check
        %p128 = pneg %p29
      $region26: #{decoder_img_forward.8} parent=23 // pred_check_branch
        %130 = sbr.rel (%p128) target = $region28
      $region27: #{decoder_img_forward.8} parent=23 // pred_region
        %s131 = smul.u32 2, %s9
        %p132 = scmp.lt.s32.totalorder %s131, 3
        %s133 = scalar_select %p132, %s131, 3
        %s134 = smul.addr %s133, 4
        %s135 = scalar_lea.vmem %s0, %s134
        %s136 = smul.u32 2, %s9
      $region28: #{decoder_img_forward.8} parent=23 // pred_fallthru
        _
    $region24: #{decoder_img_forward.8} parent=5 // pred_fallthru
      _
    %p137 = scmp.le.s32.totalorder 1, %s9
    %p138 = scmp.lt.s32.totalorder %s9, 3
    %p139 = pnand %p137, %p138
    %p140 = pneg %p139
    // Predicated region
    $region29: #{decoder_img_forward.8} parent=5 // pred_check
      _
    $region30: #{decoder_img_forward.8} parent=5 // pred_check_branch
      %142 = sbr.rel (%p139) target = $region32
    $region31: #{decoder_img_forward.8} parent=5 // pred_region
      %s143 = ssub.s32 %s9, 1
      %s144 = smul.u32 2, %s14
      %p145 = scmp.lt.s32.totalorder %s144, 3
      %s146 = scalar_select %p145, %s144, 3
      %s147 = smul.addr %s146, 4
      %s148 = scalar_lea.vmem %s0, %s147
      %p149 = pneg %p35
      %p150 = pneg %p32
      %p151 = pneg %p56
      %p152 = pneg %p53
      %p153 = pneg %p77
      %p154 = pneg %p74
      %p155 = pneg %p103
      %p156 = pneg %p100
      %s157 = smul.u32 2, %s14
      %p158 = scmp.lt.s32.totalorder %s157, 3
      %s159 = scalar_select %p158, %s157, 3
      %s160 = smul.addr %s159, 3
      %s161 = smul.addr %s160, 8
      %s162 = scalar_lea.vmem %s3, %s161
      %s163 = smul.u32 2, %s14
      %p164 = scmp.lt.s32.totalorder %s163, 3
      %s165 = scalar_select %p164, %s163, 3
      %s166 = smul.addr %s165, 4
      %s167 = scalar_lea.vmem %s0, %s166
      %s168 = smul.u32 2, %s14
      %s169 = smul.u32 2, %s14
      %p170 = scmp.lt.s32.totalorder %s169, 3
      %s171 = scalar_select %p170, %s169, 3
      %s172 = smul.addr %s171, 3
      %s173 = smul.addr %s172, 8
      %s174 = scalar_lea.vmem %s3, %s173
      %s175 = smul.u32 2, %s14
      %v177 = vld [vmem:[%s167] sm:$0xf]
      %v178 = vld [vmem:[%s167 + $0x4] sm:$0xf]
      %v179 = vld [vmem:[%s1] sm:$0xff]
      %v180 = vld [vmem:[%s1 + $0x8] sm:$0xf]
      %v181 = vld [vmem:[%s1 + $0xc] sm:$0xff]
      %v182 = vld [vmem:[%s1 + $0x14] sm:$0xf]
      %v183 = vld [vmem:[%s1 + $0x18] sm:$0xff]
      %v184 = vld [vmem:[%s1 + $0x20] sm:$0xf]
      %v185 = vld [vmem:[%s1 + $0x24] sm:$0xff]
      %v186 = vld [vmem:[%s1 + $0x2c] sm:$0xf]
      %v187 = vld [vmem:[%s2] sm:$0x7]
      %v189 = vlaneseq
      %v190 = vshrl.u32 %v189, 7
      %v191 = vsub.s32 0, %v190
      %v192 = vrot.slane %v187, %v191
      %v193 = vlaneseq
      %v194 = vshrl.u32 %v193, 7
      %v195 = vsub.s32 1, %v194
      %v196 = vrot.slane %v187, %v195
      %v197 = vlaneseq
      %v198 = vshrl.u32 %v197, 7
      %v199 = vsub.s32 2, %v198
      %v200 = vrot.slane %v187, %v199
      %v206 = vunpack.c.l.b16 %v177
      %v207 = vunpack.c.l.b16 %v178
      %v208 = vpack.c.b16 %v207, %v206
      %v217 = vunpack.c.l.b16 %v179
      %v218 = vunpack.c.h.b16 %v179
      %v219 = vunpack.c.l.b16 %v180
      %v220 = vunpack.c.l.b16 %v181
      %v221 = vunpack.c.h.b16 %v181
      %v222 = vunpack.c.l.b16 %v182
      %v223 = vunpack.c.l.b16 %v183
      %v224 = vunpack.c.h.b16 %v183
      %v225 = vunpack.c.l.b16 %v184
      %v226 = vunpack.c.l.b16 %v185
      %v227 = vunpack.c.h.b16 %v185
      %v228 = vunpack.c.l.b16 %v186
      %v229 = vpack.c.b16 %v220, %v217
      %v230 = vpack.c.b16 %v221, %v218
      %v231 = vpack.c.b16 %v222, %v219
      %v232 = vpack.c.b16 %v226, %v223
      %v233 = vpack.c.b16 %v227, %v224
      %v234 = vpack.c.b16 %v228, %v225
      %vm241 = vcmask 261120
      %v243 = vsel %vm241, %v208, 0
      %245 = vmatprep.subr.bf16.mxu0 %v230
      %246 = vmatpush1.bf16.msra.mxu0 %v229
      %247 = vmatprep.subr.bf16.mxu0 %v233
      %248 = vmatpush1.bf16.msra.mxu0 %v232
      %249 = vmatprep.subr.bf16.mxu0 0
      %250 = vmatpush1.bf16.msra.mxu0 0
      %251 = vmatprep.subr.bf16.mxu0 0
      %252 = vmatpush1.bf16.msra.mxu0 0
      %253 = vmatprep.subr.bf16.mxu0 0
      %254 = vmatpush1.bf16.msra.mxu0 0
      %255 = vmatprep.subr.bf16.mxu0 0
      %256 = vmatpush1.bf16.msra.mxu0 0
      %257 = vmatprep.subr.bf16.mxu0 0
      %258 = vmatpush1.bf16.msra.mxu0 0
      %259 = vmatprep.subr.bf16.mxu0 0
      %260 = vmatpush1.bf16.msra.mxu0 0
      %261 = vmatprep.subr.bf16.mxu0 0
      %262 = vmatpush1.bf16.msra.mxu0 0
      %263 = vmatprep.subr.bf16.mxu0 0
      %264 = vmatpush1.bf16.msra.mxu0 0
      %265 = vmatprep.subr.bf16.mxu0 0
      %266 = vmatpush1.bf16.msra.mxu0 0
      %267 = vmatprep.subr.bf16.mxu0 0
      %268 = vmatpush1.bf16.msra.mxu0 0
      %269 = vmatprep.subr.bf16.mxu0 0
      %270 = vmatpush1.bf16.msra.mxu0 0
      %271 = vmatprep.subr.bf16.mxu0 0
      %272 = vmatpush1.bf16.msra.mxu0 0
      %273 = vmatprep.subr.bf16.mxu0 0
      %274 = vmatpush1.bf16.msra.mxu0 0
      %275 = vmatprep.subr.bf16.mxu0 0
      %276 = vmatpush1.bf16.msra.mxu0 0
      %277 = vmatprep.mubr.bf16.mxu0 0
      %278 = vmatmul.mubr.bf16.gmra.mrb[0].mxu0 %v243
      %v279 = vpop.f32.mrb[0].mxu0
      %v280 = vadd.f32 %v192, %v279
      %v281 = vpop.f32.mrb[0].mxu0
      %v282 = vadd.f32 %v196, %v281
      %v283 = vpop.f32.mrb[0].mxu0
      %v284 = vadd.f32 %v192, %v283
      %v285 = vpop.f32.mrb[0].mxu0
      %v286 = vadd.f32 %v196, %v285
      %287 = vdwg.mxu0
      %288 = vmatprep.subr.bf16.mxu0 0
      %289 = vmatpush1.bf16.msra.mxu0 %v231
      %290 = vmatprep.subr.bf16.mxu0 0
      %291 = vmatpush1.bf16.msra.mxu0 %v234
      %292 = vmatprep.subr.bf16.mxu0 0
      %293 = vmatpush1.bf16.msra.mxu0 0
      %294 = vmatprep.subr.bf16.mxu0 0
      %295 = vmatpush1.bf16.msra.mxu0 0
      %296 = vmatprep.subr.bf16.mxu0 0
      %297 = vmatpush1.bf16.msra.mxu0 0
      %298 = vmatprep.subr.bf16.mxu0 0
      %299 = vmatpush1.bf16.msra.mxu0 0
      %300 = vmatprep.subr.bf16.mxu0 0
      %301 = vmatpush1.bf16.msra.mxu0 0
      %302 = vmatprep.subr.bf16.mxu0 0
      %303 = vmatpush1.bf16.msra.mxu0 0
      %304 = vmatprep.subr.bf16.mxu0 0
      %305 = vmatpush1.bf16.msra.mxu0 0
      %306 = vmatprep.subr.bf16.mxu0 0
      %307 = vmatpush1.bf16.msra.mxu0 0
      %308 = vmatprep.subr.bf16.mxu0 0
      %309 = vmatpush1.bf16.msra.mxu0 0
      %310 = vmatprep.subr.bf16.mxu0 0
      %311 = vmatpush1.bf16.msra.mxu0 0
      %312 = vmatprep.subr.bf16.mxu0 0
      %313 = vmatpush1.bf16.msra.mxu0 0
      %314 = vmatprep.subr.bf16.mxu0 0
      %315 = vmatpush1.bf16.msra.mxu0 0
      %316 = vmatprep.subr.bf16.mxu0 0
      %317 = vmatpush1.bf16.msra.mxu0 0
      %318 = vmatprep.subr.bf16.mxu0 0
      %319 = vmatpush1.bf16.msra.mxu0 0
      %320 = vmatprep.mubr.bf16.mxu0 0
      %321 = vmatmul.mubr.bf16.gmra.mrb[0].mxu0 %v243
      %v322 = vpop.f32.mrb[0].mxu0
      %v323 = vadd.f32 %v200, %v322
      %v324 = vpop.f32.mrb[0].mxu0
      %v325 = vpop.f32.mrb[0].mxu0
      %v326 = vadd.f32 %v200, %v325
      %v327 = vpop.f32.mrb[0].mxu0
      %328 = vdwg.mxu0
      %329 = vst [vmem:[%s174] sm:$0xff] %v280
      %330 = vst [vmem:[%s174 + $0x8] sm:$0xff] %v282
      %331 = vst [vmem:[%s174 + $0x10] sm:$0xff] %v323
      %332 = vst [vmem:[%s174 + $0x18] sm:$0xff] %v284
      %333 = vst [vmem:[%s174 + $0x20] sm:$0xff] %v286
      %334 = vst [vmem:[%s174 + $0x28] sm:$0xff] %v326
      %s335 = smul.u32 2, %s14
      %p336 = scmp.lt.s32.totalorder %s335, 3
      %s337 = scalar_select %p336, %s335, 3
      %s338 = smul.addr %s337, 3
      %s339 = smul.addr %s338, 8
      %s340 = scalar_lea.vmem %s3, %s339
      // Predicated region
      $region33: #{decoder_img_forward.8} parent=31 // pred_check
        %p341 = pneg %p100
      $region34: #{decoder_img_forward.8} parent=31 // pred_check_branch
        %343 = sbr.rel (%p341) target = $region36
      $region35: #{decoder_img_forward.8} parent=31 // pred_region
        %s344 = smul.u32 2, %s14
      $region36: #{decoder_img_forward.8} parent=31 // pred_fallthru
        _
    $region32: #{decoder_img_forward.8} parent=5 // pred_fallthru
      _
    %p345 = scmp.le.s32.totalorder 2, %s9
    // Predicated region
    $region37: #{decoder_img_forward.8} parent=5 // pred_check
      %p346 = pneg %p345
    $region38: #{decoder_img_forward.8} parent=5 // pred_check_branch
      %348 = sbr.rel (%p346) target = $region40
    $region39: #{decoder_img_forward.8} parent=5 // pred_region
      %s349 = ssub.s32 %s9, 2
      // Predicated region
      $region41: #{decoder_img_forward.8} parent=39 // pred_check
        %p350 = pneg %p106
      $region42: #{decoder_img_forward.8} parent=39 // pred_check_branch
        %352 = sbr.rel (%p350) target = $region44
      $region43: #{decoder_img_forward.8} parent=39 // pred_region
        %s353 = smul.u32 2, %s15
        %p354 = scmp.lt.s32.totalorder %s353, 3
        %s355 = scalar_select %p354, %s353, 3
        %s356 = smul.addr %s355, 3
        %s357 = smul.addr %s356, 8
        %s358 = scalar_lea.vmem %s3, %s357
      $region44: #{decoder_img_forward.8} parent=39 // pred_fallthru
        _
    $region40: #{decoder_img_forward.8} parent=5 // pred_fallthru
      _
  $region6: #{decoder_img_forward.8} parent=0 // loop_footer
    %s13 = sadd.s32 1, %s9
  $region7: #{decoder_img_forward.8} parent=0 // loop_footer_branch
    %8 = sbr.rel target = $region3
  $region8: #{decoder_img_forward.8} parent=0 // loop_exit
    _

// kernel: decoder_img_forward.9
$region0: #{decoder_img_forward.9}
  #allocation0 [shape = 'u32[]', space=smem, size = 0x4, offset = 0x4, fixed_abs, tag = 'smem constant byte address 0x4 - core index']
  #allocation1 [shape = 'u32[144,128]{1,0:T(1,128)}', space=vmem, size = 0x12000, scoped, tag = 'internal scratch']
  %s0 = inlined_call_operand.vmem [shape: bf16[128,24], index: 0, kind: input, shape index: {}]
  %s1 = inlined_call_operand.vmem [shape: bf16[24,256], index: 1, kind: input, shape index: {}]
  %s2 = inlined_call_operand.vmem [shape: f32[1,256], index: 2, kind: input, shape index: {}]
  %s3 = inlined_call_operand.vmem [shape: f32[128,256], index: 3, kind: output, shape index: {}]
  %s4 = sld [smem:[#allocation0]]
  $region45: #{decoder_img_forward.9} parent=0
    _
  %s6 = ssub.s32 1, %s4
  %s7 = scalar_select 0, %s6, %s4
  loop: start=0, step=1, limit=4
  $region2: #{decoder_img_forward.9} parent=0 // loop_pre_header
    _
  $region3: #{decoder_img_forward.9} parent=0 // loop_header
    %s9 = sphi 0, %s13
    %p10 = scmp.ge.s32.totalorder %s9, 4
    %s19 = sphi 0, %s21
    %s22 = sphi 0, %s19
    %s23 = sphi 0, %s22
    %s39 = sphi 0, %s23
    %s43 = sphi 0, %s43
    %s45 = sphi 0, %s43
    %s46 = sphi 0, %s45
    %s60 = sphi 0, %s46
    %s64 = sphi 0, %s64
    %s66 = sphi 0, %s64
    %s67 = sphi 0, %s66
    %s81 = sphi 0, %s67
    %s87 = sphi 0, %s89
    %s90 = sphi 0, %s87
    %s91 = sphi 0, %s90
    %s107 = sphi 0, %s91
  $region4: #{decoder_img_forward.9} parent=0 // loop_header_branch
    %12 = sbr.rel (%p10) target = $region8
  $region5: #{decoder_img_forward.9} parent=0 // loop_body
    %s14 = ssub.s32 %s9, 1
    %s15 = ssub.s32 %s9, 2
    %s16 = sadd.s32 %s9, 1
    %s17 = ssub.s32 %s9, %s16
    %p18 = scmp.eq.s32.totalorder %s17, 0
    %s20 = sadd.s32 %s19, 1
    %s21 = scalar_select %p18, %s19, %s20
    %p24 = pneg %p18
    %p25 = scmp.eq.s32.totalorder %s9, 1
    %p26 = por %p24, %p25
    %p27 = scmp.ne.s32.totalorder %s19, %s22
    %p28 = scmp.eq.s32.totalorder %s9, 0
    %p29 = por %p27, %p28
    %p30 = scmp.ne.s32.totalorder %s19, %s22
    %p31 = scmp.eq.s32.totalorder %s14, 1
    %p32 = por %p30, %p31
    %p33 = scmp.ne.s32.totalorder %s22, %s23
    %p34 = scmp.eq.s32.totalorder %s14, 0
    %p35 = por %p33, %p34
    %p36 = scmp.ne.s32.totalorder %s22, %s23
    %p37 = scmp.eq.s32.totalorder %s15, 1
    %p38 = por %p36, %p37
    %p40 = scmp.ne.s32.totalorder %s23, %s39
    %p41 = scmp.eq.s32.totalorder %s15, 0
    %p42 = por %p40, %p41
    %s44 = sadd.s32 %s43, 1
    %p47 = scmp.eq.s32.totalorder %s9, 1
    %p48 = scmp.ne.s32.totalorder %s43, %s45
    %p49 = scmp.eq.s32.totalorder %s9, 0
    %p50 = por %p48, %p49
    %p51 = scmp.ne.s32.totalorder %s43, %s45
    %p52 = scmp.eq.s32.totalorder %s14, 1
    %p53 = por %p51, %p52
    %p54 = scmp.ne.s32.totalorder %s45, %s46
    %p55 = scmp.eq.s32.totalorder %s14, 0
    %p56 = por %p54, %p55
    %p57 = scmp.ne.s32.totalorder %s45, %s46
    %p58 = scmp.eq.s32.totalorder %s15, 1
    %p59 = por %p57, %p58
    %p61 = scmp.ne.s32.totalorder %s46, %s60
    %p62 = scmp.eq.s32.totalorder %s15, 0
    %p63 = por %p61, %p62
    %s65 = sadd.s32 %s64, 1
    %p68 = scmp.eq.s32.totalorder %s9, 1
    %p69 = scmp.ne.s32.totalorder %s64, %s66
    %p70 = scmp.eq.s32.totalorder %s9, 0
    %p71 = por %p69, %p70
    %p72 = scmp.ne.s32.totalorder %s64, %s66
    %p73 = scmp.eq.s32.totalorder %s14, 1
    %p74 = por %p72, %p73
    %p75 = scmp.ne.s32.totalorder %s66, %s67
    %p76 = scmp.eq.s32.totalorder %s14, 0
    %p77 = por %p75, %p76
    %p78 = scmp.ne.s32.totalorder %s66, %s67
    %p79 = scmp.eq.s32.totalorder %s15, 1
    %p80 = por %p78, %p79
    %p82 = scmp.ne.s32.totalorder %s67, %s81
    %p83 = scmp.eq.s32.totalorder %s15, 0
    %p84 = por %p82, %p83
    %s85 = ssub.s32 %s9, %s16
    %p86 = scmp.eq.s32.totalorder %s85, 0
    %s88 = sadd.s32 %s87, 1
    %s89 = scalar_select %p86, %s87, %s88
    %p92 = pneg %p86
    %p93 = scmp.eq.s32.totalorder %s9, 1
    %p94 = por %p92, %p93
    %p95 = scmp.ne.s32.totalorder %s87, %s90
    %p96 = scmp.eq.s32.totalorder %s9, 0
    %p97 = por %p95, %p96
    %p98 = scmp.ne.s32.totalorder %s87, %s90
    %p99 = scmp.eq.s32.totalorder %s14, 1
    %p100 = por %p98, %p99
    %p101 = scmp.ne.s32.totalorder %s90, %s91
    %p102 = scmp.eq.s32.totalorder %s14, 0
    %p103 = por %p101, %p102
    %p104 = scmp.ne.s32.totalorder %s90, %s91
    %p105 = scmp.eq.s32.totalorder %s15, 1
    %p106 = por %p104, %p105
    %p108 = scmp.ne.s32.totalorder %s91, %s107
    %p109 = scmp.eq.s32.totalorder %s15, 0
    %p110 = por %p108, %p109
    %p111 = scmp.le.s32.totalorder 1, %s9
    %p112 = scmp.lt.s32.totalorder %s9, 3
    %p113 = pnand %p111, %p112
    %p114 = pneg %p113
    // Predicated region
    $region9: #{decoder_img_forward.9} parent=5 // pred_check
      _
    $region10: #{decoder_img_forward.9} parent=5 // pred_check_branch
      %116 = sbr.rel (%p113) target = $region12
    $region11: #{decoder_img_forward.9} parent=5 // pred_region
      %s117 = ssub.s32 %s9, 1
      // Predicated region
      $region13: #{decoder_img_forward.9} parent=11 // pred_check
        %p118 = pneg %p56
      $region14: #{decoder_img_forward.9} parent=11 // pred_check_branch
        %120 = sbr.rel (%p118) target = $region16
      $region15: #{decoder_img_forward.9} parent=11 // pred_region
        _
      $region16: #{decoder_img_forward.9} parent=11 // pred_fallthru
        _
      // Predicated region
      $region17: #{decoder_img_forward.9} parent=11 // pred_check
        %p121 = pneg %p77
      $region18: #{decoder_img_forward.9} parent=11 // pred_check_branch
        %123 = sbr.rel (%p121) target = $region20
      $region19: #{decoder_img_forward.9} parent=11 // pred_region
        _
      $region20: #{decoder_img_forward.9} parent=11 // pred_fallthru
        _
    $region12: #{decoder_img_forward.9} parent=5 // pred_fallthru
      _
    %p124 = scmp.lt.s32.totalorder %s9, 2
    // Predicated region
    $region21: #{decoder_img_forward.9} parent=5 // pred_check
      %p125 = pneg %p124
    $region22: #{decoder_img_forward.9} parent=5 // pred_check_branch
      %127 = sbr.rel (%p125) target = $region24
    $region23: #{decoder_img_forward.9} parent=5 // pred_region
      // Predicated region
      $region25: #{decoder_img_forward.9} parent=23 // pred_check
        %p128 = pneg %p29
      $region26: #{decoder_img_forward.9} parent=23 // pred_check_branch
        %130 = sbr.rel (%p128) target = $region28
      $region27: #{decoder_img_forward.9} parent=23 // pred_region
        %s131 = smul.u32 8, %s9
        %p132 = scmp.lt.s32.totalorder %s131, 15
        %s133 = scalar_select %p132, %s131, 15
        %s134 = smul.addr %s133, 4
        %s135 = scalar_lea.vmem %s0, %s134
        %s136 = smul.u32 8, %s9
      $region28: #{decoder_img_forward.9} parent=23 // pred_fallthru
        _
    $region24: #{decoder_img_forward.9} parent=5 // pred_fallthru
      _
    %p137 = scmp.le.s32.totalorder 1, %s9
    %p138 = scmp.lt.s32.totalorder %s9, 3
    %p139 = pnand %p137, %p138
    %p140 = pneg %p139
    // Predicated region
    $region29: #{decoder_img_forward.9} parent=5 // pred_check
      _
    $region30: #{decoder_img_forward.9} parent=5 // pred_check_branch
      %142 = sbr.rel (%p139) target = $region32
    $region31: #{decoder_img_forward.9} parent=5 // pred_region
      %s143 = ssub.s32 %s9, 1
      %s144 = smul.u32 8, %s14
      %p145 = scmp.lt.s32.totalorder %s144, 15
      %s146 = scalar_select %p145, %s144, 15
      %s147 = smul.addr %s146, 4
      %s148 = scalar_lea.vmem %s0, %s147
      %p149 = pneg %p35
      %p150 = pneg %p32
      %p151 = pneg %p56
      %p152 = pneg %p53
      %p153 = pneg %p77
      %p154 = pneg %p74
      %p155 = pneg %p103
      %p156 = pneg %p100
      %s157 = smul.u32 8, %s14
      %p158 = scmp.lt.s32.totalorder %s157, 15
      %s159 = scalar_select %p158, %s157, 15
      %s160 = smul.addr %s159, 2
      %s161 = smul.addr %s160, 8
      %s162 = scalar_lea.vmem %s3, %s161
      %s163 = smul.u32 8, %s14
      %p164 = scmp.lt.s32.totalorder %s163, 15
      %s165 = scalar_select %p164, %s163, 15
      %s166 = smul.addr %s165, 4
      %s167 = scalar_lea.vmem %s0, %s166
      %s168 = smul.u32 8, %s14
      %s169 = smul.u32 8, %s14
      %p170 = scmp.lt.s32.totalorder %s169, 15
      %s171 = scalar_select %p170, %s169, 15
      %s172 = smul.addr %s171, 2
      %s173 = smul.addr %s172, 8
      %s174 = scalar_lea.vmem %s3, %s173
      %s175 = smul.u32 8, %s14
      %v177 = vld [vmem:[%s167] sm:$0xf]
      %v178 = vld [vmem:[%s167 + $0x4] sm:$0xf]
      %v179 = vld [vmem:[%s167 + $0x8] sm:$0xf]
      %v180 = vld [vmem:[%s167 + $0xc] sm:$0xf]
      %v181 = vld [vmem:[%s167 + $0x10] sm:$0xf]
      %v182 = vld [vmem:[%s167 + $0x14] sm:$0xf]
      %v183 = vld [vmem:[%s167 + $0x18] sm:$0xf]
      %v184 = vld [vmem:[%s167 + $0x1c] sm:$0xf]
      %v185 = vld [vmem:[%s1] sm:$0xff]
      %v186 = vld [vmem:[%s1 + $0x8] sm:$0xff]
      %v187 = vld [vmem:[%s1 + $0x10] sm:$0xff]
      %v188 = vld [vmem:[%s2] sm:$0x3]
      %v190 = vlaneseq
      %v191 = vshrl.u32 %v190, 7
      %v192 = vsub.s32 0, %v191
      %v193 = vrot.slane %v188, %v192
      %v194 = vlaneseq
      %v195 = vshrl.u32 %v194, 7
      %v196 = vsub.s32 1, %v195
      %v197 = vrot.slane %v188, %v196
      %v208 = vunpack.c.l.b16 %v177
      %v209 = vunpack.c.l.b16 %v178
      %v210 = vunpack.c.l.b16 %v179
      %v211 = vunpack.c.l.b16 %v180
      %v212 = vunpack.c.l.b16 %v181
      %v213 = vunpack.c.l.b16 %v182
      %v214 = vunpack.c.l.b16 %v183
      %v215 = vunpack.c.l.b16 %v184
      %v216 = vpack.c.b16 %v209, %v208
      %v217 = vpack.c.b16 %v211, %v210
      %v218 = vpack.c.b16 %v213, %v212
      %v219 = vpack.c.b16 %v215, %v214
      %v223 = vunpack.c.l.b16 %v185
      %v224 = vunpack.c.h.b16 %v185
      %v225 = vunpack.c.l.b16 %v186
      %v226 = vunpack.c.h.b16 %v186
      %v227 = vunpack.c.l.b16 %v187
      %v228 = vunpack.c.h.b16 %v187
      %v229 = vpack.c.b16 %v225, %v223
      %v230 = vpack.c.b16 %v226, %v224
      %v231 = vpack.c.b16 %v227, %v227
      %v232 = vpack.c.b16 %v228, %v228
      %vm235 = vcmask 195584
      %v237 = vsel %vm235, %v216, 0
      %v240 = vsel %vm235, %v217, 0
      %v243 = vsel %vm235, %v218, 0
      %v246 = vsel %vm235, %v219, 0
      %vm248 = vcmask 1043456
      %v250 = vsel %vm248, %v231, 0
      %v253 = vsel %vm248, %v232, 0
      %255 = vmatprep.subr.bf16.mxu0 %v230
      %256 = vmatpush1.bf16.msra.mxu0 %v229
      %257 = vmatprep.subr.bf16.mxu0 %v253
      %258 = vmatpush1.bf16.msra.mxu0 %v250
      %259 = vmatprep.subr.bf16.mxu0 0
      %260 = vmatpush1.bf16.msra.mxu0 0
      %261 = vmatprep.subr.bf16.mxu0 0
      %262 = vmatpush1.bf16.msra.mxu0 0
      %263 = vmatprep.subr.bf16.mxu0 0
      %264 = vmatpush1.bf16.msra.mxu0 0
      %265 = vmatprep.subr.bf16.mxu0 0
      %266 = vmatpush1.bf16.msra.mxu0 0
      %267 = vmatprep.subr.bf16.mxu0 0
      %268 = vmatpush1.bf16.msra.mxu0 0
      %269 = vmatprep.subr.bf16.mxu0 0
      %270 = vmatpush1.bf16.msra.mxu0 0
      %271 = vmatprep.subr.bf16.mxu0 0
      %272 = vmatpush1.bf16.msra.mxu0 0
      %273 = vmatprep.subr.bf16.mxu0 0
      %274 = vmatpush1.bf16.msra.mxu0 0
      %275 = vmatprep.subr.bf16.mxu0 0
      %276 = vmatpush1.bf16.msra.mxu0 0
      %277 = vmatprep.subr.bf16.mxu0 0
      %278 = vmatpush1.bf16.msra.mxu0 0
      %279 = vmatprep.subr.bf16.mxu0 0
      %280 = vmatpush1.bf16.msra.mxu0 0
      %281 = vmatprep.subr.bf16.mxu0 0
      %282 = vmatpush1.bf16.msra.mxu0 0
      %283 = vmatprep.subr.bf16.mxu0 0
      %284 = vmatpush1.bf16.msra.mxu0 0
      %285 = vmatprep.subr.bf16.mxu0 0
      %286 = vmatpush1.bf16.msra.mxu0 0
      %287 = vmatprep.mubr.bf16.mxu0 0
      %288 = vmatmul.mubr.bf16.gmra.mrb[0].mxu0 %v237
      %v289 = vpop.f32.mrb[0].mxu0
      %v290 = vadd.f32 %v193, %v289
      %v291 = vpop.f32.mrb[0].mxu0
      %v292 = vadd.f32 %v197, %v291
      %v293 = vpop.f32.mrb[0].mxu0
      %v294 = vadd.f32 %v193, %v293
      %v295 = vpop.f32.mrb[0].mxu0
      %v296 = vadd.f32 %v197, %v295
      %297 = vmatprep.mubr.bf16.mxu0 0
      %298 = vmatmul.mubr.bf16.gmra.mrb[0].mxu0 %v240
      %v299 = vpop.f32.mrb[0].mxu0
      %v300 = vadd.f32 %v193, %v299
      %v301 = vpop.f32.mrb[0].mxu0
      %v302 = vadd.f32 %v197, %v301
      %v303 = vpop.f32.mrb[0].mxu0
      %v304 = vadd.f32 %v193, %v303
      %v305 = vpop.f32.mrb[0].mxu0
      %v306 = vadd.f32 %v197, %v305
      %307 = vmatprep.mubr.bf16.mxu0 0
      %308 = vmatmul.mubr.bf16.gmra.mrb[0].mxu0 %v243
      %v309 = vpop.f32.mrb[0].mxu0
      %v310 = vadd.f32 %v193, %v309
      %v311 = vpop.f32.mrb[0].mxu0
      %v312 = vadd.f32 %v197, %v311
      %v313 = vpop.f32.mrb[0].mxu0
      %v314 = vadd.f32 %v193, %v313
      %v315 = vpop.f32.mrb[0].mxu0
      %v316 = vadd.f32 %v197, %v315
      %317 = vmatprep.mubr.bf16.mxu0 0
      %318 = vmatmul.mubr.bf16.gmra.mrb[0].mxu0 %v246
      %v319 = vpop.f32.mrb[0].mxu0
      %v320 = vadd.f32 %v193, %v319
      %v321 = vpop.f32.mrb[0].mxu0
      %v322 = vadd.f32 %v197, %v321
      %v323 = vpop.f32.mrb[0].mxu0
      %v324 = vadd.f32 %v193, %v323
      %v325 = vpop.f32.mrb[0].mxu0
      %v326 = vadd.f32 %v197, %v325
      %327 = vdwg.mxu0
      %328 = vst [vmem:[%s174] sm:$0xff] %v290
      %329 = vst [vmem:[%s174 + $0x8] sm:$0xff] %v292
      %330 = vst [vmem:[%s174 + $0x10] sm:$0xff] %v294
      %331 = vst [vmem:[%s174 + $0x18] sm:$0xff] %v296
      %332 = vst [vmem:[%s174 + $0x20] sm:$0xff] %v300
      %333 = vst [vmem:[%s174 + $0x28] sm:$0xff] %v302
      %334 = vst [vmem:[%s174 + $0x30] sm:$0xff] %v304
      %335 = vst [vmem:[%s174 + $0x38] sm:$0xff] %v306
      %336 = vst [vmem:[%s174 + $0x40] sm:$0xff] %v310
      %337 = vst [vmem:[%s174 + $0x48] sm:$0xff] %v312
      %338 = vst [vmem:[%s174 + $0x50] sm:$0xff] %v314
      %339 = vst [vmem:[%s174 + $0x58] sm:$0xff] %v316
      %340 = vst [vmem:[%s174 + $0x60] sm:$0xff] %v320
      %341 = vst [vmem:[%s174 + $0x68] sm:$0xff] %v322
      %342 = vst [vmem:[%s174 + $0x70] sm:$0xff] %v324
      %343 = vst [vmem:[%s174 + $0x78] sm:$0xff] %v326
      %s344 = smul.u32 8, %s14
      %p345 = scmp.lt.s32.totalorder %s344, 15
      %s346 = scalar_select %p345, %s344, 15
      %s347 = smul.addr %s346, 2
      %s348 = smul.addr %s347, 8
      %s349 = scalar_lea.vmem %s3, %s348
      // Predicated region
      $region33: #{decoder_img_forward.9} parent=31 // pred_check
        %p350 = pneg %p100
      $region34: #{decoder_img_forward.9} parent=31 // pred_check_branch
        %352 = sbr.rel (%p350) target = $region36
      $region35: #{decoder_img_forward.9} parent=31 // pred_region
        %s353 = smul.u32 8, %s14
      $region36: #{decoder_img_forward.9} parent=31 // pred_fallthru
        _
    $region32: #{decoder_img_forward.9} parent=5 // pred_fallthru
      _
    %p354 = scmp.le.s32.totalorder 2, %s9
    // Predicated region
    $region37: #{decoder_img_forward.9} parent=5 // pred_check
      %p355 = pneg %p354
    $region38: #{decoder_img_forward.9} parent=5 // pred_check_branch
      %357 = sbr.rel (%p355) target = $region40
    $region39: #{decoder_img_forward.9} parent=5 // pred_region
      %s358 = ssub.s32 %s9, 2
      // Predicated region
      $region41: #{decoder_img_forward.9} parent=39 // pred_check
        %p359 = pneg %p106
      $region42: #{decoder_img_forward.9} parent=39 // pred_check_branch
        %361 = sbr.rel (%p359) target = $region44
      $region43: #{decoder_img_forward.9} parent=39 // pred_region
        %s362 = smul.u32 8, %s15
        %p363 = scmp.lt.s32.totalorder %s362, 15
        %s364 = scalar_select %p363, %s362, 15
        %s365 = smul.addr %s364, 2
        %s366 = smul.addr %s365, 8
        %s367 = scalar_lea.vmem %s3, %s366
      $region44: #{decoder_img_forward.9} parent=39 // pred_fallthru
        _
    $region40: #{decoder_img_forward.9} parent=5 // pred_fallthru
      _
  $region6: #{decoder_img_forward.9} parent=0 // loop_footer
    %s13 = sadd.s32 1, %s9
  $region7: #{decoder_img_forward.9} parent=0 // loop_footer_branch
    %8 = sbr.rel target = $region3
  $region8: #{decoder_img_forward.9} parent=0 // loop_exit
    _

// kernel: decoder_img_forward.10
$region0: #{decoder_img_forward.10}
  #allocation0 [shape = 'u32[]', space=smem, size = 0x4, offset = 0x4, fixed_abs, tag = 'smem constant byte address 0x4 - core index']
  #allocation1 [shape = 'u32[144,128]{1,0:T(1,128)}', space=vmem, size = 0x12000, scoped, tag = 'internal scratch']
  %s0 = inlined_call_operand.vmem [shape: bf16[512,16], index: 0, kind: input, shape index: {}]
  %s1 = inlined_call_operand.vmem [shape: bf16[16,128], index: 1, kind: input, shape index: {}]
  %s2 = inlined_call_operand.vmem [shape: f32[1,128], index: 2, kind: input, shape index: {}]
  %s3 = inlined_call_operand.vmem [shape: f32[512,128], index: 3, kind: output, shape index: {}]
  %s4 = sld [smem:[#allocation0]]
  $region45: #{decoder_img_forward.10} parent=0
    _
  %s6 = ssub.s32 1, %s4
  %s7 = scalar_select 0, %s6, %s4
  loop: start=0, step=1, limit=4
  $region2: #{decoder_img_forward.10} parent=0 // loop_pre_header
    _
  $region3: #{decoder_img_forward.10} parent=0 // loop_header
    %s9 = sphi 0, %s13
    %p10 = scmp.ge.s32.totalorder %s9, 4
    %s19 = sphi 0, %s21
    %s22 = sphi 0, %s19
    %s23 = sphi 0, %s22
    %s39 = sphi 0, %s23
    %s43 = sphi 0, %s43
    %s45 = sphi 0, %s43
    %s46 = sphi 0, %s45
    %s60 = sphi 0, %s46
    %s64 = sphi 0, %s64
    %s66 = sphi 0, %s64
    %s67 = sphi 0, %s66
    %s81 = sphi 0, %s67
    %s87 = sphi 0, %s89
    %s90 = sphi 0, %s87
    %s91 = sphi 0, %s90
    %s107 = sphi 0, %s91
  $region4: #{decoder_img_forward.10} parent=0 // loop_header_branch
    %12 = sbr.rel (%p10) target = $region8
  $region5: #{decoder_img_forward.10} parent=0 // loop_body
    %s14 = ssub.s32 %s9, 1
    %s15 = ssub.s32 %s9, 2
    %s16 = sadd.s32 %s9, 1
    %s17 = ssub.s32 %s9, %s16
    %p18 = scmp.eq.s32.totalorder %s17, 0
    %s20 = sadd.s32 %s19, 1
    %s21 = scalar_select %p18, %s19, %s20
    %p24 = pneg %p18
    %p25 = scmp.eq.s32.totalorder %s9, 1
    %p26 = por %p24, %p25
    %p27 = scmp.ne.s32.totalorder %s19, %s22
    %p28 = scmp.eq.s32.totalorder %s9, 0
    %p29 = por %p27, %p28
    %p30 = scmp.ne.s32.totalorder %s19, %s22
    %p31 = scmp.eq.s32.totalorder %s14, 1
    %p32 = por %p30, %p31
    %p33 = scmp.ne.s32.totalorder %s22, %s23
    %p34 = scmp.eq.s32.totalorder %s14, 0
    %p35 = por %p33, %p34
    %p36 = scmp.ne.s32.totalorder %s22, %s23
    %p37 = scmp.eq.s32.totalorder %s15, 1
    %p38 = por %p36, %p37
    %p40 = scmp.ne.s32.totalorder %s23, %s39
    %p41 = scmp.eq.s32.totalorder %s15, 0
    %p42 = por %p40, %p41
    %s44 = sadd.s32 %s43, 1
    %p47 = scmp.eq.s32.totalorder %s9, 1
    %p48 = scmp.ne.s32.totalorder %s43, %s45
    %p49 = scmp.eq.s32.totalorder %s9, 0
    %p50 = por %p48, %p49
    %p51 = scmp.ne.s32.totalorder %s43, %s45
    %p52 = scmp.eq.s32.totalorder %s14, 1
    %p53 = por %p51, %p52
    %p54 = scmp.ne.s32.totalorder %s45, %s46
    %p55 = scmp.eq.s32.totalorder %s14, 0
    %p56 = por %p54, %p55
    %p57 = scmp.ne.s32.totalorder %s45, %s46
    %p58 = scmp.eq.s32.totalorder %s15, 1
    %p59 = por %p57, %p58
    %p61 = scmp.ne.s32.totalorder %s46, %s60
    %p62 = scmp.eq.s32.totalorder %s15, 0
    %p63 = por %p61, %p62
    %s65 = sadd.s32 %s64, 1
    %p68 = scmp.eq.s32.totalorder %s9, 1
    %p69 = scmp.ne.s32.totalorder %s64, %s66
    %p70 = scmp.eq.s32.totalorder %s9, 0
    %p71 = por %p69, %p70
    %p72 = scmp.ne.s32.totalorder %s64, %s66
    %p73 = scmp.eq.s32.totalorder %s14, 1
    %p74 = por %p72, %p73
    %p75 = scmp.ne.s32.totalorder %s66, %s67
    %p76 = scmp.eq.s32.totalorder %s14, 0
    %p77 = por %p75, %p76
    %p78 = scmp.ne.s32.totalorder %s66, %s67
    %p79 = scmp.eq.s32.totalorder %s15, 1
    %p80 = por %p78, %p79
    %p82 = scmp.ne.s32.totalorder %s67, %s81
    %p83 = scmp.eq.s32.totalorder %s15, 0
    %p84 = por %p82, %p83
    %s85 = ssub.s32 %s9, %s16
    %p86 = scmp.eq.s32.totalorder %s85, 0
    %s88 = sadd.s32 %s87, 1
    %s89 = scalar_select %p86, %s87, %s88
    %p92 = pneg %p86
    %p93 = scmp.eq.s32.totalorder %s9, 1
    %p94 = por %p92, %p93
    %p95 = scmp.ne.s32.totalorder %s87, %s90
    %p96 = scmp.eq.s32.totalorder %s9, 0
    %p97 = por %p95, %p96
    %p98 = scmp.ne.s32.totalorder %s87, %s90
    %p99 = scmp.eq.s32.totalorder %s14, 1
    %p100 = por %p98, %p99
    %p101 = scmp.ne.s32.totalorder %s90, %s91
    %p102 = scmp.eq.s32.totalorder %s14, 0
    %p103 = por %p101, %p102
    %p104 = scmp.ne.s32.totalorder %s90, %s91
    %p105 = scmp.eq.s32.totalorder %s15, 1
    %p106 = por %p104, %p105
    %p108 = scmp.ne.s32.totalorder %s91, %s107
    %p109 = scmp.eq.s32.totalorder %s15, 0
    %p110 = por %p108, %p109
    %p111 = scmp.le.s32.totalorder 1, %s9
    %p112 = scmp.lt.s32.totalorder %s9, 3
    %p113 = pnand %p111, %p112
    %p114 = pneg %p113
    // Predicated region
    $region9: #{decoder_img_forward.10} parent=5 // pred_check
      _
    $region10: #{decoder_img_forward.10} parent=5 // pred_check_branch
      %116 = sbr.rel (%p113) target = $region12
    $region11: #{decoder_img_forward.10} parent=5 // pred_region
      %s117 = ssub.s32 %s9, 1
      // Predicated region
      $region13: #{decoder_img_forward.10} parent=11 // pred_check
        %p118 = pneg %p56
      $region14: #{decoder_img_forward.10} parent=11 // pred_check_branch
        %120 = sbr.rel (%p118) target = $region16
      $region15: #{decoder_img_forward.10} parent=11 // pred_region
        _
      $region16: #{decoder_img_forward.10} parent=11 // pred_fallthru
        _
      // Predicated region
      $region17: #{decoder_img_forward.10} parent=11 // pred_check
        %p121 = pneg %p77
      $region18: #{decoder_img_forward.10} parent=11 // pred_check_branch
        %123 = sbr.rel (%p121) target = $region20
      $region19: #{decoder_img_forward.10} parent=11 // pred_region
        _
      $region20: #{decoder_img_forward.10} parent=11 // pred_fallthru
        _
    $region12: #{decoder_img_forward.10} parent=5 // pred_fallthru
      _
    %p124 = scmp.lt.s32.totalorder %s9, 2
    // Predicated region
    $region21: #{decoder_img_forward.10} parent=5 // pred_check
      %p125 = pneg %p124
    $region22: #{decoder_img_forward.10} parent=5 // pred_check_branch
      %127 = sbr.rel (%p125) target = $region24
    $region23: #{decoder_img_forward.10} parent=5 // pred_region
      // Predicated region
      $region25: #{decoder_img_forward.10} parent=23 // pred_check
        %p128 = pneg %p29
      $region26: #{decoder_img_forward.10} parent=23 // pred_check_branch
        %130 = sbr.rel (%p128) target = $region28
      $region27: #{decoder_img_forward.10} parent=23 // pred_region
        %s131 = smul.u32 32, %s9
        %p132 = scmp.lt.s32.totalorder %s131, 63
        %s133 = scalar_select %p132, %s131, 63
        %s134 = smul.addr %s133, 4
        %s135 = scalar_lea.vmem %s0, %s134
        %s136 = smul.u32 32, %s9
      $region28: #{decoder_img_forward.10} parent=23 // pred_fallthru
        _
    $region24: #{decoder_img_forward.10} parent=5 // pred_fallthru
      _
    %p137 = scmp.le.s32.totalorder 1, %s9
    %p138 = scmp.lt.s32.totalorder %s9, 3
    %p139 = pnand %p137, %p138
    %p140 = pneg %p139
    // Predicated region
    $region29: #{decoder_img_forward.10} parent=5 // pred_check
      _
    $region30: #{decoder_img_forward.10} parent=5 // pred_check_branch
      %142 = sbr.rel (%p139) target = $region32
    $region31: #{decoder_img_forward.10} parent=5 // pred_region
      %s143 = ssub.s32 %s9, 1
      %s144 = smul.u32 32, %s14
      %p145 = scmp.lt.s32.totalorder %s144, 63
      %s146 = scalar_select %p145, %s144, 63
      %s147 = smul.addr %s146, 4
      %s148 = scalar_lea.vmem %s0, %s147
      %p149 = pneg %p35
      %p150 = pneg %p32
      %p151 = pneg %p56
      %p152 = pneg %p53
      %p153 = pneg %p77
      %p154 = pneg %p74
      %p155 = pneg %p103
      %p156 = pneg %p100
      %s157 = smul.u32 32, %s14
      %p158 = scmp.lt.s32.totalorder %s157, 63
      %s159 = scalar_select %p158, %s157, 63
      %s160 = smul.addr %s159, 8
      %s161 = scalar_lea.vmem %s3, %s160
      %s162 = smul.u32 32, %s14
      %p163 = scmp.lt.s32.totalorder %s162, 63
      %s164 = scalar_select %p163, %s162, 63
      %s165 = smul.addr %s164, 4
      %s166 = scalar_lea.vmem %s0, %s165
      %s167 = smul.u32 32, %s14
      %s168 = smul.u32 32, %s14
      %p169 = scmp.lt.s32.totalorder %s168, 63
      %s170 = scalar_select %p169, %s168, 63
      %s171 = smul.addr %s170, 8
      %s172 = scalar_lea.vmem %s3, %s171
      %s173 = smul.u32 32, %s14
      %v175 = vld [vmem:[%s166] sm:$0xf]
      %v176 = vld [vmem:[%s166 + $0x4] sm:$0xf]
      %v177 = vld [vmem:[%s166 + $0x8] sm:$0xf]
      %v178 = vld [vmem:[%s166 + $0xc] sm:$0xf]
      %v179 = vld [vmem:[%s166 + $0x10] sm:$0xf]
      %v180 = vld [vmem:[%s166 + $0x14] sm:$0xf]
      %v181 = vld [vmem:[%s166 + $0x18] sm:$0xf]
      %v182 = vld [vmem:[%s166 + $0x1c] sm:$0xf]
      %v183 = vld [vmem:[%s166 + $0x20] sm:$0xf]
      %v184 = vld [vmem:[%s166 + $0x24] sm:$0xf]
      %v185 = vld [vmem:[%s166 + $0x28] sm:$0xf]
      %v186 = vld [vmem:[%s166 + $0x2c] sm:$0xf]
      %v187 = vld [vmem:[%s166 + $0x30] sm:$0xf]
      %v188 = vld [vmem:[%s166 + $0x34] sm:$0xf]
      %v189 = vld [vmem:[%s166 + $0x38] sm:$0xf]
      %v190 = vld [vmem:[%s166 + $0x3c] sm:$0xf]
      %v191 = vld [vmem:[%s166 + $0x40] sm:$0xf]
      %v192 = vld [vmem:[%s166 + $0x44] sm:$0xf]
      %v193 = vld [vmem:[%s166 + $0x48] sm:$0xf]
      %v194 = vld [vmem:[%s166 + $0x4c] sm:$0xf]
      %v195 = vld [vmem:[%s166 + $0x50] sm:$0xf]
      %v196 = vld [vmem:[%s166 + $0x54] sm:$0xf]
      %v197 = vld [vmem:[%s166 + $0x58] sm:$0xf]
      %v198 = vld [vmem:[%s166 + $0x5c] sm:$0xf]
      %v199 = vld [vmem:[%s166 + $0x60] sm:$0xf]
      %v200 = vld [vmem:[%s166 + $0x64] sm:$0xf]
      %v201 = vld [vmem:[%s166 + $0x68] sm:$0xf]
      %v202 = vld [vmem:[%s166 + $0x6c] sm:$0xf]
      %v203 = vld [vmem:[%s166 + $0x70] sm:$0xf]
      %v204 = vld [vmem:[%s166 + $0x74] sm:$0xf]
      %v205 = vld [vmem:[%s166 + $0x78] sm:$0xf]
      %v206 = vld [vmem:[%s166 + $0x7c] sm:$0xf]
      %v207 = vld [vmem:[%s1] sm:$0xf]
      %v208 = vld [vmem:[%s1 + $0x4] sm:$0xf]
      %v209 = vld [vmem:[%s2] sm:$0x1]
      %v211 = vlaneseq
      %v212 = vshrl.u32 %v211, 7
      %v213 = vsub.s32 0, %v212
      %v214 = vrot.slane %v209, %v213
      %v248 = vunpack.c.l.b16 %v175
      %v249 = vunpack.c.l.b16 %v176
      %v250 = vunpack.c.l.b16 %v177
      %v251 = vunpack.c.l.b16 %v178
      %v252 = vunpack.c.l.b16 %v179
      %v253 = vunpack.c.l.b16 %v180
      %v254 = vunpack.c.l.b16 %v181
      %v255 = vunpack.c.l.b16 %v182
      %v256 = vunpack.c.l.b16 %v183
      %v257 = vunpack.c.l.b16 %v184
      %v258 = vunpack.c.l.b16 %v185
      %v259 = vunpack.c.l.b16 %v186
      %v260 = vunpack.c.l.b16 %v187
      %v261 = vunpack.c.l.b16 %v188
      %v262 = vunpack.c.l.b16 %v189
      %v263 = vunpack.c.l.b16 %v190
      %v264 = vunpack.c.l.b16 %v191
      %v265 = vunpack.c.l.b16 %v192
      %v266 = vunpack.c.l.b16 %v193
      %v267 = vunpack.c.l.b16 %v194
      %v268 = vunpack.c.l.b16 %v195
      %v269 = vunpack.c.l.b16 %v196
      %v270 = vunpack.c.l.b16 %v197
      %v271 = vunpack.c.l.b16 %v198
      %v272 = vunpack.c.l.b16 %v199
      %v273 = vunpack.c.l.b16 %v200
      %v274 = vunpack.c.l.b16 %v201
      %v275 = vunpack.c.l.b16 %v202
      %v276 = vunpack.c.l.b16 %v203
      %v277 = vunpack.c.l.b16 %v204
      %v278 = vunpack.c.l.b16 %v205
      %v279 = vunpack.c.l.b16 %v206
      %v280 = vpack.c.b16 %v249, %v248
      %v281 = vpack.c.b16 %v251, %v250
      %v282 = vpack.c.b16 %v253, %v252
      %v283 = vpack.c.b16 %v255, %v254
      %v284 = vpack.c.b16 %v257, %v256
      %v285 = vpack.c.b16 %v259, %v258
      %v286 = vpack.c.b16 %v261, %v260
      %v287 = vpack.c.b16 %v263, %v262
      %v288 = vpack.c.b16 %v265, %v264
      %v289 = vpack.c.b16 %v267, %v266
      %v290 = vpack.c.b16 %v269, %v268
      %v291 = vpack.c.b16 %v271, %v270
      %v292 = vpack.c.b16 %v273, %v272
      %v293 = vpack.c.b16 %v275, %v274
      %v294 = vpack.c.b16 %v277, %v276
      %v295 = vpack.c.b16 %v279, %v278
      %v298 = vunpack.c.l.b16 %v207
      %v299 = vunpack.c.l.b16 %v208
      %v300 = vpack.c.b16 %v299, %v298
      %vm302 = vcmask 130048
      %v304 = vsel %vm302, %v280, 0
      %v307 = vsel %vm302, %v281, 0
      %v310 = vsel %vm302, %v282, 0
      %v313 = vsel %vm302, %v283, 0
      %v316 = vsel %vm302, %v284, 0
      %v319 = vsel %vm302, %v285, 0
      %v322 = vsel %vm302, %v286, 0
      %v325 = vsel %vm302, %v287, 0
      %v328 = vsel %vm302, %v288, 0
      %v331 = vsel %vm302, %v289, 0
      %v334 = vsel %vm302, %v290, 0
      %v337 = vsel %vm302, %v291, 0
      %v340 = vsel %vm302, %v292, 0
      %v343 = vsel %vm302, %v293, 0
      %v346 = vsel %vm302, %v294, 0
      %v349 = vsel %vm302, %v295, 0
      %351 = vmatprep.subr.bf16.mxu0 0
      %352 = vmatpush1.bf16.msra.mxu0 %v300
      %353 = vmatprep.subr.bf16.mxu0 0
      %354 = vmatpush1.bf16.msra.mxu0 0
      %355 = vmatprep.subr.bf16.mxu0 0
      %356 = vmatpush1.bf16.msra.mxu0 0
      %357 = vmatprep.subr.bf16.mxu0 0
      %358 = vmatpush1.bf16.msra.mxu0 0
      %359 = vmatprep.subr.bf16.mxu0 0
      %360 = vmatpush1.bf16.msra.mxu0 0
      %361 = vmatprep.subr.bf16.mxu0 0
      %362 = vmatpush1.bf16.msra.mxu0 0
      %363 = vmatprep.subr.bf16.mxu0 0
      %364 = vmatpush1.bf16.msra.mxu0 0
      %365 = vmatprep.subr.bf16.mxu0 0
      %366 = vmatpush1.bf16.msra.mxu0 0
      %367 = vmatprep.subr.bf16.mxu0 0
      %368 = vmatpush1.bf16.msra.mxu0 0
      %369 = vmatprep.subr.bf16.mxu0 0
      %370 = vmatpush1.bf16.msra.mxu0 0
      %371 = vmatprep.subr.bf16.mxu0 0
      %372 = vmatpush1.bf16.msra.mxu0 0
      %373 = vmatprep.subr.bf16.mxu0 0
      %374 = vmatpush1.bf16.msra.mxu0 0
      %375 = vmatprep.subr.bf16.mxu0 0
      %376 = vmatpush1.bf16.msra.mxu0 0
      %377 = vmatprep.subr.bf16.mxu0 0
      %378 = vmatpush1.bf16.msra.mxu0 0
      %379 = vmatprep.subr.bf16.mxu0 0
      %380 = vmatpush1.bf16.msra.mxu0 0
      %381 = vmatprep.subr.bf16.mxu0 0
      %382 = vmatpush1.bf16.msra.mxu0 0
      %383 = vmatprep.mubr.bf16.mxu0 0
      %384 = vmatmul.mubr.bf16.gmra.mrb[0].mxu0 %v304
      %v385 = vpop.f32.mrb[0].mxu0
      %v386 = vadd.f32 %v214, %v385
      %v387 = vpop.f32.mrb[0].mxu0
      %v388 = vpop.f32.mrb[0].mxu0
      %v389 = vadd.f32 %v214, %v388
      %v390 = vpop.f32.mrb[0].mxu0
      %391 = vmatprep.mubr.bf16.mxu0 0
      %392 = vmatmul.mubr.bf16.gmra.mrb[0].mxu0 %v307
      %v393 = vpop.f32.mrb[0].mxu0
      %v394 = vadd.f32 %v214, %v393
      %v395 = vpop.f32.mrb[0].mxu0
      %v396 = vpop.f32.mrb[0].mxu0
      %v397 = vadd.f32 %v214, %v396
      %v398 = vpop.f32.mrb[0].mxu0
      %399 = vmatprep.mubr.bf16.mxu0 0
      %400 = vmatmul.mubr.bf16.gmra.mrb[0].mxu0 %v310
      %v401 = vpop.f32.mrb[0].mxu0
      %v402 = vadd.f32 %v214, %v401
      %v403 = vpop.f32.mrb[0].mxu0
      %v404 = vpop.f32.mrb[0].mxu0
      %v405 = vadd.f32 %v214, %v404
      %v406 = vpop.f32.mrb[0].mxu0
      %407 = vmatprep.mubr.bf16.mxu0 0
      %408 = vmatmul.mubr.bf16.gmra.mrb[0].mxu0 %v313
      %v409 = vpop.f32.mrb[0].mxu0
      %v410 = vadd.f32 %v214, %v409
      %v411 = vpop.f32.mrb[0].mxu0
      %v412 = vpop.f32.mrb[0].mxu0
      %v413 = vadd.f32 %v214, %v412
      %v414 = vpop.f32.mrb[0].mxu0
      %415 = vmatprep.mubr.bf16.mxu0 0
      %416 = vmatmul.mubr.bf16.gmra.mrb[0].mxu0 %v316
      %v417 = vpop.f32.mrb[0].mxu0
      %v418 = vadd.f32 %v214, %v417
      %v419 = vpop.f32.mrb[0].mxu0
      %v420 = vpop.f32.mrb[0].mxu0
      %v421 = vadd.f32 %v214, %v420
      %v422 = vpop.f32.mrb[0].mxu0
      %423 = vmatprep.mubr.bf16.mxu0 0
      %424 = vmatmul.mubr.bf16.gmra.mrb[0].mxu0 %v319
      %v425 = vpop.f32.mrb[0].mxu0
      %v426 = vadd.f32 %v214, %v425
      %v427 = vpop.f32.mrb[0].mxu0
      %v428 = vpop.f32.mrb[0].mxu0
      %v429 = vadd.f32 %v214, %v428
      %v430 = vpop.f32.mrb[0].mxu0
      %431 = vmatprep.mubr.bf16.mxu0 0
      %432 = vmatmul.mubr.bf16.gmra.mrb[0].mxu0 %v322
      %v433 = vpop.f32.mrb[0].mxu0
      %v434 = vadd.f32 %v214, %v433
      %v435 = vpop.f32.mrb[0].mxu0
      %v436 = vpop.f32.mrb[0].mxu0
      %v437 = vadd.f32 %v214, %v436
      %v438 = vpop.f32.mrb[0].mxu0
      %439 = vmatprep.mubr.bf16.mxu0 0
      %440 = vmatmul.mubr.bf16.gmra.mrb[0].mxu0 %v325
      %v441 = vpop.f32.mrb[0].mxu0
      %v442 = vadd.f32 %v214, %v441
      %v443 = vpop.f32.mrb[0].mxu0
      %v444 = vpop.f32.mrb[0].mxu0
      %v445 = vadd.f32 %v214, %v444
      %v446 = vpop.f32.mrb[0].mxu0
      %447 = vmatprep.mubr.bf16.mxu0 0
      %448 = vmatmul.mubr.bf16.gmra.mrb[0].mxu0 %v328
      %v449 = vpop.f32.mrb[0].mxu0
      %v450 = vadd.f32 %v214, %v449
      %v451 = vpop.f32.mrb[0].mxu0
      %v452 = vpop.f32.mrb[0].mxu0
      %v453 = vadd.f32 %v214, %v452
      %v454 = vpop.f32.mrb[0].mxu0
      %455 = vmatprep.mubr.bf16.mxu0 0
      %456 = vmatmul.mubr.bf16.gmra.mrb[0].mxu0 %v331
      %v457 = vpop.f32.mrb[0].mxu0
      %v458 = vadd.f32 %v214, %v457
      %v459 = vpop.f32.mrb[0].mxu0
      %v460 = vpop.f32.mrb[0].mxu0
      %v461 = vadd.f32 %v214, %v460
      %v462 = vpop.f32.mrb[0].mxu0
      %463 = vmatprep.mubr.bf16.mxu0 0
      %464 = vmatmul.mubr.bf16.gmra.mrb[0].mxu0 %v334
      %v465 = vpop.f32.mrb[0].mxu0
      %v466 = vadd.f32 %v214, %v465
      %v467 = vpop.f32.mrb[0].mxu0
      %v468 = vpop.f32.mrb[0].mxu0
      %v469 = vadd.f32 %v214, %v468
      %v470 = vpop.f32.mrb[0].mxu0
      %471 = vmatprep.mubr.bf16.mxu0 0
      %472 = vmatmul.mubr.bf16.gmra.mrb[0].mxu0 %v337
      %v473 = vpop.f32.mrb[0].mxu0
      %v474 = vadd.f32 %v214, %v473
      %v475 = vpop.f32.mrb[0].mxu0
      %v476 = vpop.f32.mrb[0].mxu0
      %v477 = vadd.f32 %v214, %v476
      %v478 = vpop.f32.mrb[0].mxu0
      %479 = vmatprep.mubr.bf16.mxu0 0
      %480 = vmatmul.mubr.bf16.gmra.mrb[0].mxu0 %v340
      %v481 = vpop.f32.mrb[0].mxu0
      %v482 = vadd.f32 %v214, %v481
      %v483 = vpop.f32.mrb[0].mxu0
      %v484 = vpop.f32.mrb[0].mxu0
      %v485 = vadd.f32 %v214, %v484
      %v486 = vpop.f32.mrb[0].mxu0
      %487 = vmatprep.mubr.bf16.mxu0 0
      %488 = vmatmul.mubr.bf16.gmra.mrb[0].mxu0 %v343
      %v489 = vpop.f32.mrb[0].mxu0
      %v490 = vadd.f32 %v214, %v489
      %v491 = vpop.f32.mrb[0].mxu0
      %v492 = vpop.f32.mrb[0].mxu0
      %v493 = vadd.f32 %v214, %v492
      %v494 = vpop.f32.mrb[0].mxu0
      %495 = vmatprep.mubr.bf16.mxu0 0
      %496 = vmatmul.mubr.bf16.gmra.mrb[0].mxu0 %v346
      %v497 = vpop.f32.mrb[0].mxu0
      %v498 = vadd.f32 %v214, %v497
      %v499 = vpop.f32.mrb[0].mxu0
      %v500 = vpop.f32.mrb[0].mxu0
      %v501 = vadd.f32 %v214, %v500
      %v502 = vpop.f32.mrb[0].mxu0
      %503 = vmatprep.mubr.bf16.mxu0 0
      %504 = vmatmul.mubr.bf16.gmra.mrb[0].mxu0 %v349
      %v505 = vpop.f32.mrb[0].mxu0
      %v506 = vadd.f32 %v214, %v505
      %v507 = vpop.f32.mrb[0].mxu0
      %v508 = vpop.f32.mrb[0].mxu0
      %v509 = vadd.f32 %v214, %v508
      %v510 = vpop.f32.mrb[0].mxu0
      %511 = vdwg.mxu0
      %512 = vst [vmem:[%s172] sm:$0xff] %v386
      %513 = vst [vmem:[%s172 + $0x8] sm:$0xff] %v389
      %514 = vst [vmem:[%s172 + $0x10] sm:$0xff] %v394
      %515 = vst [vmem:[%s172 + $0x18] sm:$0xff] %v397
      %516 = vst [vmem:[%s172 + $0x20] sm:$0xff] %v402
      %517 = vst [vmem:[%s172 + $0x28] sm:$0xff] %v405
      %518 = vst [vmem:[%s172 + $0x30] sm:$0xff] %v410
      %519 = vst [vmem:[%s172 + $0x38] sm:$0xff] %v413
      %520 = vst [vmem:[%s172 + $0x40] sm:$0xff] %v418
      %521 = vst [vmem:[%s172 + $0x48] sm:$0xff] %v421
      %522 = vst [vmem:[%s172 + $0x50] sm:$0xff] %v426
      %523 = vst [vmem:[%s172 + $0x58] sm:$0xff] %v429
      %524 = vst [vmem:[%s172 + $0x60] sm:$0xff] %v434
      %525 = vst [vmem:[%s172 + $0x68] sm:$0xff] %v437
      %526 = vst [vmem:[%s172 + $0x70] sm:$0xff] %v442
      %527 = vst [vmem:[%s172 + $0x78] sm:$0xff] %v445
      %528 = vst [vmem:[%s172 + $0x80] sm:$0xff] %v450
      %529 = vst [vmem:[%s172 + $0x88] sm:$0xff] %v453
      %530 = vst [vmem:[%s172 + $0x90] sm:$0xff] %v458
      %531 = vst [vmem:[%s172 + $0x98] sm:$0xff] %v461
      %532 = vst [vmem:[%s172 + $0xa0] sm:$0xff] %v466
      %533 = vst [vmem:[%s172 + $0xa8] sm:$0xff] %v469
      %534 = vst [vmem:[%s172 + $0xb0] sm:$0xff] %v474
      %535 = vst [vmem:[%s172 + $0xb8] sm:$0xff] %v477
      %536 = vst [vmem:[%s172 + $0xc0] sm:$0xff] %v482
      %537 = vst [vmem:[%s172 + $0xc8] sm:$0xff] %v485
      %538 = vst [vmem:[%s172 + $0xd0] sm:$0xff] %v490
      %539 = vst [vmem:[%s172 + $0xd8] sm:$0xff] %v493
      %540 = vst [vmem:[%s172 + $0xe0] sm:$0xff] %v498
      %541 = vst [vmem:[%s172 + $0xe8] sm:$0xff] %v501
      %542 = vst [vmem:[%s172 + $0xf0] sm:$0xff] %v506
      %543 = vst [vmem:[%s172 + $0xf8] sm:$0xff] %v509
      %s544 = smul.u32 32, %s14
      %p545 = scmp.lt.s32.totalorder %s544, 63
      %s546 = scalar_select %p545, %s544, 63
      %s547 = smul.addr %s546, 8
      %s548 = scalar_lea.vmem %s3, %s547
      // Predicated region
      $region33: #{decoder_img_forward.10} parent=31 // pred_check
        %p549 = pneg %p100
      $region34: #{decoder_img_forward.10} parent=31 // pred_check_branch
        %551 = sbr.rel (%p549) target = $region36
      $region35: #{decoder_img_forward.10} parent=31 // pred_region
        %s552 = smul.u32 32, %s14
      $region36: #{decoder_img_forward.10} parent=31 // pred_fallthru
        _
    $region32: #{decoder_img_forward.10} parent=5 // pred_fallthru
      _
    %p553 = scmp.le.s32.totalorder 2, %s9
    // Predicated region
    $region37: #{decoder_img_forward.10} parent=5 // pred_check
      %p554 = pneg %p553
    $region38: #{decoder_img_forward.10} parent=5 // pred_check_branch
      %556 = sbr.rel (%p554) target = $region40
    $region39: #{decoder_img_forward.10} parent=5 // pred_region
      %s557 = ssub.s32 %s9, 2
      // Predicated region
      $region41: #{decoder_img_forward.10} parent=39 // pred_check
        %p558 = pneg %p106
      $region42: #{decoder_img_forward.10} parent=39 // pred_check_branch
        %560 = sbr.rel (%p558) target = $region44
      $region43: #{decoder_img_forward.10} parent=39 // pred_region
        %s561 = smul.u32 32, %s15
        %p562 = scmp.lt.s32.totalorder %s561, 63
        %s563 = scalar_select %p562, %s561, 63
        %s564 = smul.addr %s563, 8
        %s565 = scalar_lea.vmem %s3, %s564
      $region44: #{decoder_img_forward.10} parent=39 // pred_fallthru
        _
    $region40: #{decoder_img_forward.10} parent=5 // pred_fallthru
      _
  $region6: #{decoder_img_forward.10} parent=0 // loop_footer
    %s13 = sadd.s32 1, %s9
  $region7: #{decoder_img_forward.10} parent=0 // loop_footer_branch
    %8 = sbr.rel target = $region3
  $region8: #{decoder_img_forward.10} parent=0 // loop_exit
    _

// kernel: decoder_img_forward.11
$region0: #{decoder_img_forward.11}
  #allocation0 [shape = 'u32[]', space=smem, size = 0x4, offset = 0x4, fixed_abs, tag = 'smem constant byte address 0x4 - core index']
  #allocation1 [shape = 'u32[144,128]{1,0:T(1,128)}', space=vmem, size = 0x12000, scoped, tag = 'internal scratch']
  %s0 = inlined_call_operand.vmem [shape: bf16[2048,8], index: 0, kind: input, shape index: {}]
  %s1 = inlined_call_operand.vmem [shape: bf16[8,128], index: 1, kind: input, shape index: {}]
  %s2 = inlined_call_operand.vmem [shape: f32[1,128], index: 2, kind: input, shape index: {}]
  %s3 = inlined_call_operand.vmem [shape: f32[2048,128], index: 3, kind: output, shape index: {}]
  %s4 = sld [smem:[#allocation0]]
  $region45: #{decoder_img_forward.11} parent=0
    _
  %s6 = ssub.s32 1, %s4
  %s7 = scalar_select 0, %s6, %s4
  loop: start=0, step=1, limit=6
  $region2: #{decoder_img_forward.11} parent=0 // loop_pre_header
    _
  $region3: #{decoder_img_forward.11} parent=0 // loop_header
    %s9 = sphi 0, %s13
    %p10 = scmp.ge.s32.totalorder %s9, 6
    %s19 = sphi 0, %s21
    %s22 = sphi 0, %s19
    %s23 = sphi 0, %s22
    %s39 = sphi 0, %s23
    %s43 = sphi 0, %s43
    %s45 = sphi 0, %s43
    %s46 = sphi 0, %s45
    %s60 = sphi 0, %s46
    %s64 = sphi 0, %s64
    %s66 = sphi 0, %s64
    %s67 = sphi 0, %s66
    %s81 = sphi 0, %s67
    %s87 = sphi 0, %s89
    %s90 = sphi 0, %s87
    %s91 = sphi 0, %s90
    %s107 = sphi 0, %s91
  $region4: #{decoder_img_forward.11} parent=0 // loop_header_branch
    %12 = sbr.rel (%p10) target = $region8
  $region5: #{decoder_img_forward.11} parent=0 // loop_body
    %s14 = ssub.s32 %s9, 1
    %s15 = ssub.s32 %s9, 2
    %s16 = sadd.s32 %s9, 1
    %s17 = ssub.s32 %s9, %s16
    %p18 = scmp.eq.s32.totalorder %s17, 0
    %s20 = sadd.s32 %s19, 1
    %s21 = scalar_select %p18, %s19, %s20
    %p24 = pneg %p18
    %p25 = scmp.eq.s32.totalorder %s9, 3
    %p26 = por %p24, %p25
    %p27 = scmp.ne.s32.totalorder %s19, %s22
    %p28 = scmp.eq.s32.totalorder %s9, 0
    %p29 = por %p27, %p28
    %p30 = scmp.ne.s32.totalorder %s19, %s22
    %p31 = scmp.eq.s32.totalorder %s14, 3
    %p32 = por %p30, %p31
    %p33 = scmp.ne.s32.totalorder %s22, %s23
    %p34 = scmp.eq.s32.totalorder %s14, 0
    %p35 = por %p33, %p34
    %p36 = scmp.ne.s32.totalorder %s22, %s23
    %p37 = scmp.eq.s32.totalorder %s15, 3
    %p38 = por %p36, %p37
    %p40 = scmp.ne.s32.totalorder %s23, %s39
    %p41 = scmp.eq.s32.totalorder %s15, 0
    %p42 = por %p40, %p41
    %s44 = sadd.s32 %s43, 1
    %p47 = scmp.eq.s32.totalorder %s9, 3
    %p48 = scmp.ne.s32.totalorder %s43, %s45
    %p49 = scmp.eq.s32.totalorder %s9, 0
    %p50 = por %p48, %p49
    %p51 = scmp.ne.s32.totalorder %s43, %s45
    %p52 = scmp.eq.s32.totalorder %s14, 3
    %p53 = por %p51, %p52
    %p54 = scmp.ne.s32.totalorder %s45, %s46
    %p55 = scmp.eq.s32.totalorder %s14, 0
    %p56 = por %p54, %p55
    %p57 = scmp.ne.s32.totalorder %s45, %s46
    %p58 = scmp.eq.s32.totalorder %s15, 3
    %p59 = por %p57, %p58
    %p61 = scmp.ne.s32.totalorder %s46, %s60
    %p62 = scmp.eq.s32.totalorder %s15, 0
    %p63 = por %p61, %p62
    %s65 = sadd.s32 %s64, 1
    %p68 = scmp.eq.s32.totalorder %s9, 3
    %p69 = scmp.ne.s32.totalorder %s64, %s66
    %p70 = scmp.eq.s32.totalorder %s9, 0
    %p71 = por %p69, %p70
    %p72 = scmp.ne.s32.totalorder %s64, %s66
    %p73 = scmp.eq.s32.totalorder %s14, 3
    %p74 = por %p72, %p73
    %p75 = scmp.ne.s32.totalorder %s66, %s67
    %p76 = scmp.eq.s32.totalorder %s14, 0
    %p77 = por %p75, %p76
    %p78 = scmp.ne.s32.totalorder %s66, %s67
    %p79 = scmp.eq.s32.totalorder %s15, 3
    %p80 = por %p78, %p79
    %p82 = scmp.ne.s32.totalorder %s67, %s81
    %p83 = scmp.eq.s32.totalorder %s15, 0
    %p84 = por %p82, %p83
    %s85 = ssub.s32 %s9, %s16
    %p86 = scmp.eq.s32.totalorder %s85, 0
    %s88 = sadd.s32 %s87, 1
    %s89 = scalar_select %p86, %s87, %s88
    %p92 = pneg %p86
    %p93 = scmp.eq.s32.totalorder %s9, 3
    %p94 = por %p92, %p93
    %p95 = scmp.ne.s32.totalorder %s87, %s90
    %p96 = scmp.eq.s32.totalorder %s9, 0
    %p97 = por %p95, %p96
    %p98 = scmp.ne.s32.totalorder %s87, %s90
    %p99 = scmp.eq.s32.totalorder %s14, 3
    %p100 = por %p98, %p99
    %p101 = scmp.ne.s32.totalorder %s90, %s91
    %p102 = scmp.eq.s32.totalorder %s14, 0
    %p103 = por %p101, %p102
    %p104 = scmp.ne.s32.totalorder %s90, %s91
    %p105 = scmp.eq.s32.totalorder %s15, 3
    %p106 = por %p104, %p105
    %p108 = scmp.ne.s32.totalorder %s91, %s107
    %p109 = scmp.eq.s32.totalorder %s15, 0
    %p110 = por %p108, %p109
    %p111 = scmp.le.s32.totalorder 1, %s9
    %p112 = scmp.lt.s32.totalorder %s9, 5
    %p113 = pnand %p111, %p112
    %p114 = pneg %p113
    // Predicated region
    $region9: #{decoder_img_forward.11} parent=5 // pred_check
      _
    $region10: #{decoder_img_forward.11} parent=5 // pred_check_branch
      %116 = sbr.rel (%p113) target = $region12
    $region11: #{decoder_img_forward.11} parent=5 // pred_region
      %s117 = ssub.s32 %s9, 1
      // Predicated region
      $region13: #{decoder_img_forward.11} parent=11 // pred_check
        %p118 = pneg %p56
      $region14: #{decoder_img_forward.11} parent=11 // pred_check_branch
        %120 = sbr.rel (%p118) target = $region16
      $region15: #{decoder_img_forward.11} parent=11 // pred_region
        _
      $region16: #{decoder_img_forward.11} parent=11 // pred_fallthru
        _
      // Predicated region
      $region17: #{decoder_img_forward.11} parent=11 // pred_check
        %p121 = pneg %p77
      $region18: #{decoder_img_forward.11} parent=11 // pred_check_branch
        %123 = sbr.rel (%p121) target = $region20
      $region19: #{decoder_img_forward.11} parent=11 // pred_region
        _
      $region20: #{decoder_img_forward.11} parent=11 // pred_fallthru
        _
    $region12: #{decoder_img_forward.11} parent=5 // pred_fallthru
      _
    %p124 = scmp.lt.s32.totalorder %s9, 4
    // Predicated region
    $region21: #{decoder_img_forward.11} parent=5 // pred_check
      %p125 = pneg %p124
    $region22: #{decoder_img_forward.11} parent=5 // pred_check_branch
      %127 = sbr.rel (%p125) target = $region24
    $region23: #{decoder_img_forward.11} parent=5 // pred_region
      // Predicated region
      $region25: #{decoder_img_forward.11} parent=23 // pred_check
        %p128 = pneg %p29
      $region26: #{decoder_img_forward.11} parent=23 // pred_check_branch
        %130 = sbr.rel (%p128) target = $region28
      $region27: #{decoder_img_forward.11} parent=23 // pred_region
        %s131 = smul.u32 64, %s9
        %p132 = scmp.lt.s32.totalorder %s131, 255
        %s133 = scalar_select %p132, %s131, 255
        %s134 = smul.addr %s133, 4
        %s135 = scalar_lea.vmem %s0, %s134
        %s136 = smul.u32 64, %s9
      $region28: #{decoder_img_forward.11} parent=23 // pred_fallthru
        _
    $region24: #{decoder_img_forward.11} parent=5 // pred_fallthru
      _
    %p137 = scmp.le.s32.totalorder 1, %s9
    %p138 = scmp.lt.s32.totalorder %s9, 5
    %p139 = pnand %p137, %p138
    %p140 = pneg %p139
    // Predicated region
    $region29: #{decoder_img_forward.11} parent=5 // pred_check
      _
    $region30: #{decoder_img_forward.11} parent=5 // pred_check_branch
      %142 = sbr.rel (%p139) target = $region32
    $region31: #{decoder_img_forward.11} parent=5 // pred_region
      %s143 = ssub.s32 %s9, 1
      %s144 = smul.u32 64, %s14
      %p145 = scmp.lt.s32.totalorder %s144, 255
      %s146 = scalar_select %p145, %s144, 255
      %s147 = smul.addr %s146, 4
      %s148 = scalar_lea.vmem %s0, %s147
      %p149 = pneg %p35
      %p150 = pneg %p32
      %p151 = pneg %p56
      %p152 = pneg %p53
      %p153 = pneg %p77
      %p154 = pneg %p74
      %p155 = pneg %p103
      %p156 = pneg %p100
      %s157 = smul.u32 64, %s14
      %p158 = scmp.lt.s32.totalorder %s157, 255
      %s159 = scalar_select %p158, %s157, 255
      %s160 = smul.addr %s159, 8
      %s161 = scalar_lea.vmem %s3, %s160
      %s162 = smul.u32 64, %s14
      %p163 = scmp.lt.s32.totalorder %s162, 255
      %s164 = scalar_select %p163, %s162, 255
      %s165 = smul.addr %s164, 4
      %s166 = scalar_lea.vmem %s0, %s165
      %s167 = smul.u32 64, %s14
      %s168 = smul.u32 64, %s14
      %p169 = scmp.lt.s32.totalorder %s168, 255
      %s170 = scalar_select %p169, %s168, 255
      %s171 = smul.addr %s170, 8
      %s172 = scalar_lea.vmem %s3, %s171
      %s173 = smul.u32 64, %s14
      %v175 = vld [vmem:[%s166] sm:$0xf]
      %v176 = vld [vmem:[%s166 + $0x4] sm:$0xf]
      %v177 = vld [vmem:[%s166 + $0x8] sm:$0xf]
      %v178 = vld [vmem:[%s166 + $0xc] sm:$0xf]
      %v179 = vld [vmem:[%s166 + $0x10] sm:$0xf]
      %v180 = vld [vmem:[%s166 + $0x14] sm:$0xf]
      %v181 = vld [vmem:[%s166 + $0x18] sm:$0xf]
      %v182 = vld [vmem:[%s166 + $0x1c] sm:$0xf]
      %v183 = vld [vmem:[%s166 + $0x20] sm:$0xf]
      %v184 = vld [vmem:[%s166 + $0x24] sm:$0xf]
      %v185 = vld [vmem:[%s166 + $0x28] sm:$0xf]
      %v186 = vld [vmem:[%s166 + $0x2c] sm:$0xf]
      %v187 = vld [vmem:[%s166 + $0x30] sm:$0xf]
      %v188 = vld [vmem:[%s166 + $0x34] sm:$0xf]
      %v189 = vld [vmem:[%s166 + $0x38] sm:$0xf]
      %v190 = vld [vmem:[%s166 + $0x3c] sm:$0xf]
      %v191 = vld [vmem:[%s166 + $0x40] sm:$0xf]
      %v192 = vld [vmem:[%s166 + $0x44] sm:$0xf]
      %v193 = vld [vmem:[%s166 + $0x48] sm:$0xf]
      %v194 = vld [vmem:[%s166 + $0x4c] sm:$0xf]
      %v195 = vld [vmem:[%s166 + $0x50] sm:$0xf]
      %v196 = vld [vmem:[%s166 + $0x54] sm:$0xf]
      %v197 = vld [vmem:[%s166 + $0x58] sm:$0xf]
      %v198 = vld [vmem:[%s166 + $0x5c] sm:$0xf]
      %v199 = vld [vmem:[%s166 + $0x60] sm:$0xf]
      %v200 = vld [vmem:[%s166 + $0x64] sm:$0xf]
      %v201 = vld [vmem:[%s166 + $0x68] sm:$0xf]
      %v202 = vld [vmem:[%s166 + $0x6c] sm:$0xf]
      %v203 = vld [vmem:[%s166 + $0x70] sm:$0xf]
      %v204 = vld [vmem:[%s166 + $0x74] sm:$0xf]
      %v205 = vld [vmem:[%s166 + $0x78] sm:$0xf]
      %v206 = vld [vmem:[%s166 + $0x7c] sm:$0xf]
      %v207 = vld [vmem:[%s166 + $0x80] sm:$0xf]
      %v208 = vld [vmem:[%s166 + $0x84] sm:$0xf]
      %v209 = vld [vmem:[%s166 + $0x88] sm:$0xf]
      %v210 = vld [vmem:[%s166 + $0x8c] sm:$0xf]
      %v211 = vld [vmem:[%s166 + $0x90] sm:$0xf]
      %v212 = vld [vmem:[%s166 + $0x94] sm:$0xf]
      %v213 = vld [vmem:[%s166 + $0x98] sm:$0xf]
      %v214 = vld [vmem:[%s166 + $0x9c] sm:$0xf]
      %v215 = vld [vmem:[%s166 + $0xa0] sm:$0xf]
      %v216 = vld [vmem:[%s166 + $0xa4] sm:$0xf]
      %v217 = vld [vmem:[%s166 + $0xa8] sm:$0xf]
      %v218 = vld [vmem:[%s166 + $0xac] sm:$0xf]
      %v219 = vld [vmem:[%s166 + $0xb0] sm:$0xf]
      %v220 = vld [vmem:[%s166 + $0xb4] sm:$0xf]
      %v221 = vld [vmem:[%s166 + $0xb8] sm:$0xf]
      %v222 = vld [vmem:[%s166 + $0xbc] sm:$0xf]
      %v223 = vld [vmem:[%s166 + $0xc0] sm:$0xf]
      %v224 = vld [vmem:[%s166 + $0xc4] sm:$0xf]
      %v225 = vld [vmem:[%s166 + $0xc8] sm:$0xf]
      %v226 = vld [vmem:[%s166 + $0xcc] sm:$0xf]
      %v227 = vld [vmem:[%s166 + $0xd0] sm:$0xf]
      %v228 = vld [vmem:[%s166 + $0xd4] sm:$0xf]
      %v229 = vld [vmem:[%s166 + $0xd8] sm:$0xf]
      %v230 = vld [vmem:[%s166 + $0xdc] sm:$0xf]
      %v231 = vld [vmem:[%s166 + $0xe0] sm:$0xf]
      %v232 = vld [vmem:[%s166 + $0xe4] sm:$0xf]
      %v233 = vld [vmem:[%s166 + $0xe8] sm:$0xf]
      %v234 = vld [vmem:[%s166 + $0xec] sm:$0xf]
      %v235 = vld [vmem:[%s166 + $0xf0] sm:$0xf]
      %v236 = vld [vmem:[%s166 + $0xf4] sm:$0xf]
      %v237 = vld [vmem:[%s166 + $0xf8] sm:$0xf]
      %v238 = vld [vmem:[%s166 + $0xfc] sm:$0xf]
      %v239 = vld [vmem:[%s1] sm:$0xf]
      %v240 = vld [vmem:[%s2] sm:$0x1]
      %v242 = vlaneseq
      %v243 = vshrl.u32 %v242, 7
      %v244 = vsub.s32 0, %v243
      %v245 = vrot.slane %v240, %v244
      %v311 = vunpack.c.l.b16 %v175
      %v312 = vunpack.c.l.b16 %v176
      %v313 = vunpack.c.l.b16 %v177
      %v314 = vunpack.c.l.b16 %v178
      %v315 = vunpack.c.l.b16 %v179
      %v316 = vunpack.c.l.b16 %v180
      %v317 = vunpack.c.l.b16 %v181
      %v318 = vunpack.c.l.b16 %v182
      %v319 = vunpack.c.l.b16 %v183
      %v320 = vunpack.c.l.b16 %v184
      %v321 = vunpack.c.l.b16 %v185
      %v322 = vunpack.c.l.b16 %v186
      %v323 = vunpack.c.l.b16 %v187
      %v324 = vunpack.c.l.b16 %v188
      %v325 = vunpack.c.l.b16 %v189
      %v326 = vunpack.c.l.b16 %v190
      %v327 = vunpack.c.l.b16 %v191
      %v328 = vunpack.c.l.b16 %v192
      %v329 = vunpack.c.l.b16 %v193
      %v330 = vunpack.c.l.b16 %v194
      %v331 = vunpack.c.l.b16 %v195
      %v332 = vunpack.c.l.b16 %v196
      %v333 = vunpack.c.l.b16 %v197
      %v334 = vunpack.c.l.b16 %v198
      %v335 = vunpack.c.l.b16 %v199
      %v336 = vunpack.c.l.b16 %v200
      %v337 = vunpack.c.l.b16 %v201
      %v338 = vunpack.c.l.b16 %v202
      %v339 = vunpack.c.l.b16 %v203
      %v340 = vunpack.c.l.b16 %v204
      %v341 = vunpack.c.l.b16 %v205
      %v342 = vunpack.c.l.b16 %v206
      %v343 = vunpack.c.l.b16 %v207
      %v344 = vunpack.c.l.b16 %v208
      %v345 = vunpack.c.l.b16 %v209
      %v346 = vunpack.c.l.b16 %v210
      %v347 = vunpack.c.l.b16 %v211
      %v348 = vunpack.c.l.b16 %v212
      %v349 = vunpack.c.l.b16 %v213
      %v350 = vunpack.c.l.b16 %v214
      %v351 = vunpack.c.l.b16 %v215
      %v352 = vunpack.c.l.b16 %v216
      %v353 = vunpack.c.l.b16 %v217
      %v354 = vunpack.c.l.b16 %v218
      %v355 = vunpack.c.l.b16 %v219
      %v356 = vunpack.c.l.b16 %v220
      %v357 = vunpack.c.l.b16 %v221
      %v358 = vunpack.c.l.b16 %v222
      %v359 = vunpack.c.l.b16 %v223
      %v360 = vunpack.c.l.b16 %v224
      %v361 = vunpack.c.l.b16 %v225
      %v362 = vunpack.c.l.b16 %v226
      %v363 = vunpack.c.l.b16 %v227
      %v364 = vunpack.c.l.b16 %v228
      %v365 = vunpack.c.l.b16 %v229
      %v366 = vunpack.c.l.b16 %v230
      %v367 = vunpack.c.l.b16 %v231
      %v368 = vunpack.c.l.b16 %v232
      %v369 = vunpack.c.l.b16 %v233
      %v370 = vunpack.c.l.b16 %v234
      %v371 = vunpack.c.l.b16 %v235
      %v372 = vunpack.c.l.b16 %v236
      %v373 = vunpack.c.l.b16 %v237
      %v374 = vunpack.c.l.b16 %v238
      %v375 = vpack.c.b16 %v312, %v311
      %v376 = vpack.c.b16 %v314, %v313
      %v377 = vpack.c.b16 %v316, %v315
      %v378 = vpack.c.b16 %v318, %v317
      %v379 = vpack.c.b16 %v320, %v319
      %v380 = vpack.c.b16 %v322, %v321
      %v381 = vpack.c.b16 %v324, %v323
      %v382 = vpack.c.b16 %v326, %v325
      %v383 = vpack.c.b16 %v328, %v327
      %v384 = vpack.c.b16 %v330, %v329
      %v385 = vpack.c.b16 %v332, %v331
      %v386 = vpack.c.b16 %v334, %v333
      %v387 = vpack.c.b16 %v336, %v335
      %v388 = vpack.c.b16 %v338, %v337
      %v389 = vpack.c.b16 %v340, %v339
      %v390 = vpack.c.b16 %v342, %v341
      %v391 = vpack.c.b16 %v344, %v343
      %v392 = vpack.c.b16 %v346, %v345
      %v393 = vpack.c.b16 %v348, %v347
      %v394 = vpack.c.b16 %v350, %v349
      %v395 = vpack.c.b16 %v352, %v351
      %v396 = vpack.c.b16 %v354, %v353
      %v397 = vpack.c.b16 %v356, %v355
      %v398 = vpack.c.b16 %v358, %v357
      %v399 = vpack.c.b16 %v360, %v359
      %v400 = vpack.c.b16 %v362, %v361
      %v401 = vpack.c.b16 %v364, %v363
      %v402 = vpack.c.b16 %v366, %v365
      %v403 = vpack.c.b16 %v368, %v367
      %v404 = vpack.c.b16 %v370, %v369
      %v405 = vpack.c.b16 %v372, %v371
      %v406 = vpack.c.b16 %v374, %v373
      %vm407 = vcmask 64512
      %v409 = vsel %vm407, %v375, 0
      %v412 = vsel %vm407, %v376, 0
      %v415 = vsel %vm407, %v377, 0
      %v418 = vsel %vm407, %v378, 0
      %v421 = vsel %vm407, %v379, 0
      %v424 = vsel %vm407, %v380, 0
      %v427 = vsel %vm407, %v381, 0
      %v430 = vsel %vm407, %v382, 0
      %v433 = vsel %vm407, %v383, 0
      %v436 = vsel %vm407, %v384, 0
      %v439 = vsel %vm407, %v385, 0
      %v442 = vsel %vm407, %v386, 0
      %v445 = vsel %vm407, %v387, 0
      %v448 = vsel %vm407, %v388, 0
      %v451 = vsel %vm407, %v389, 0
      %v454 = vsel %vm407, %v390, 0
      %v457 = vsel %vm407, %v391, 0
      %v460 = vsel %vm407, %v392, 0
      %v463 = vsel %vm407, %v393, 0
      %v466 = vsel %vm407, %v394, 0
      %v469 = vsel %vm407, %v395, 0
      %v472 = vsel %vm407, %v396, 0
      %v475 = vsel %vm407, %v397, 0
      %v478 = vsel %vm407, %v398, 0
      %v481 = vsel %vm407, %v399, 0
      %v484 = vsel %vm407, %v400, 0
      %v487 = vsel %vm407, %v401, 0
      %v490 = vsel %vm407, %v402, 0
      %v493 = vsel %vm407, %v403, 0
      %v496 = vsel %vm407, %v404, 0
      %v499 = vsel %vm407, %v405, 0
      %v502 = vsel %vm407, %v406, 0
      %vm504 = vcmask 1043456
      %v506 = vsel %vm504, %v239, 0
      %508 = vmatprep.subr.bf16.mxu0 0
      %509 = vmatpush1.bf16.msra.mxu0 %v506
      %510 = vmatprep.subr.bf16.mxu0 0
      %511 = vmatpush1.bf16.msra.mxu0 0
      %512 = vmatprep.subr.bf16.mxu0 0
      %513 = vmatpush1.bf16.msra.mxu0 0
      %514 = vmatprep.subr.bf16.mxu0 0
      %515 = vmatpush1.bf16.msra.mxu0 0
      %516 = vmatprep.subr.bf16.mxu0 0
      %517 = vmatpush1.bf16.msra.mxu0 0
      %518 = vmatprep.subr.bf16.mxu0 0
      %519 = vmatpush1.bf16.msra.mxu0 0
      %520 = vmatprep.subr.bf16.mxu0 0
      %521 = vmatpush1.bf16.msra.mxu0 0
      %522 = vmatprep.subr.bf16.mxu0 0
      %523 = vmatpush1.bf16.msra.mxu0 0
      %524 = vmatprep.subr.bf16.mxu0 0
      %525 = vmatpush1.bf16.msra.mxu0 0
      %526 = vmatprep.subr.bf16.mxu0 0
      %527 = vmatpush1.bf16.msra.mxu0 0
      %528 = vmatprep.subr.bf16.mxu0 0
      %529 = vmatpush1.bf16.msra.mxu0 0
      %530 = vmatprep.subr.bf16.mxu0 0
      %531 = vmatpush1.bf16.msra.mxu0 0
      %532 = vmatprep.subr.bf16.mxu0 0
      %533 = vmatpush1.bf16.msra.mxu0 0
      %534 = vmatprep.subr.bf16.mxu0 0
      %535 = vmatpush1.bf16.msra.mxu0 0
      %536 = vmatprep.subr.bf16.mxu0 0
      %537 = vmatpush1.bf16.msra.mxu0 0
      %538 = vmatprep.subr.bf16.mxu0 0
      %539 = vmatpush1.bf16.msra.mxu0 0
      %540 = vmatprep.mubr.bf16.mxu0 0
      %541 = vmatmul.mubr.bf16.gmra.mrb[0].mxu0 %v409
      %v542 = vpop.f32.mrb[0].mxu0
      %v543 = vadd.f32 %v245, %v542
      %v544 = vpop.f32.mrb[0].mxu0
      %v545 = vpop.f32.mrb[0].mxu0
      %v546 = vadd.f32 %v245, %v545
      %v547 = vpop.f32.mrb[0].mxu0
      %548 = vmatprep.mubr.bf16.mxu0 0
      %549 = vmatmul.mubr.bf16.gmra.mrb[0].mxu0 %v412
      %v550 = vpop.f32.mrb[0].mxu0
      %v551 = vadd.f32 %v245, %v550
      %v552 = vpop.f32.mrb[0].mxu0
      %v553 = vpop.f32.mrb[0].mxu0
      %v554 = vadd.f32 %v245, %v553
      %v555 = vpop.f32.mrb[0].mxu0
      %556 = vmatprep.mubr.bf16.mxu0 0
      %557 = vmatmul.mubr.bf16.gmra.mrb[0].mxu0 %v415
      %v558 = vpop.f32.mrb[0].mxu0
      %v559 = vadd.f32 %v245, %v558
      %v560 = vpop.f32.mrb[0].mxu0
      %v561 = vpop.f32.mrb[0].mxu0
      %v562 = vadd.f32 %v245, %v561
      %v563 = vpop.f32.mrb[0].mxu0
      %564 = vmatprep.mubr.bf16.mxu0 0
      %565 = vmatmul.mubr.bf16.gmra.mrb[0].mxu0 %v418
      %v566 = vpop.f32.mrb[0].mxu0
      %v567 = vadd.f32 %v245, %v566
      %v568 = vpop.f32.mrb[0].mxu0
      %v569 = vpop.f32.mrb[0].mxu0
      %v570 = vadd.f32 %v245, %v569
      %v571 = vpop.f32.mrb[0].mxu0
      %572 = vmatprep.mubr.bf16.mxu0 0
      %573 = vmatmul.mubr.bf16.gmra.mrb[0].mxu0 %v421
      %v574 = vpop.f32.mrb[0].mxu0
      %v575 = vadd.f32 %v245, %v574
      %v576 = vpop.f32.mrb[0].mxu0
      %v577 = vpop.f32.mrb[0].mxu0
      %v578 = vadd.f32 %v245, %v577
      %v579 = vpop.f32.mrb[0].mxu0
      %580 = vmatprep.mubr.bf16.mxu0 0
      %581 = vmatmul.mubr.bf16.gmra.mrb[0].mxu0 %v424
      %v582 = vpop.f32.mrb[0].mxu0
      %v583 = vadd.f32 %v245, %v582
      %v584 = vpop.f32.mrb[0].mxu0
      %v585 = vpop.f32.mrb[0].mxu0
      %v586 = vadd.f32 %v245, %v585
      %v587 = vpop.f32.mrb[0].mxu0
      %588 = vmatprep.mubr.bf16.mxu0 0
      %589 = vmatmul.mubr.bf16.gmra.mrb[0].mxu0 %v427
      %v590 = vpop.f32.mrb[0].mxu0
      %v591 = vadd.f32 %v245, %v590
      %v592 = vpop.f32.mrb[0].mxu0
      %v593 = vpop.f32.mrb[0].mxu0
      %v594 = vadd.f32 %v245, %v593
      %v595 = vpop.f32.mrb[0].mxu0
      %596 = vmatprep.mubr.bf16.mxu0 0
      %597 = vmatmul.mubr.bf16.gmra.mrb[0].mxu0 %v430
      %v598 = vpop.f32.mrb[0].mxu0
      %v599 = vadd.f32 %v245, %v598
      %v600 = vpop.f32.mrb[0].mxu0
      %v601 = vpop.f32.mrb[0].mxu0
      %v602 = vadd.f32 %v245, %v601
      %v603 = vpop.f32.mrb[0].mxu0
      %604 = vmatprep.mubr.bf16.mxu0 0
      %605 = vmatmul.mubr.bf16.gmra.mrb[0].mxu0 %v433
      %v606 = vpop.f32.mrb[0].mxu0
      %v607 = vadd.f32 %v245, %v606
      %v608 = vpop.f32.mrb[0].mxu0
      %v609 = vpop.f32.mrb[0].mxu0
      %v610 = vadd.f32 %v245, %v609
      %v611 = vpop.f32.mrb[0].mxu0
      %612 = vmatprep.mubr.bf16.mxu0 0
      %613 = vmatmul.mubr.bf16.gmra.mrb[0].mxu0 %v436
      %v614 = vpop.f32.mrb[0].mxu0
      %v615 = vadd.f32 %v245, %v614
      %v616 = vpop.f32.mrb[0].mxu0
      %v617 = vpop.f32.mrb[0].mxu0
      %v618 = vadd.f32 %v245, %v617
      %v619 = vpop.f32.mrb[0].mxu0
      %620 = vmatprep.mubr.bf16.mxu0 0
      %621 = vmatmul.mubr.bf16.gmra.mrb[0].mxu0 %v439
      %v622 = vpop.f32.mrb[0].mxu0
      %v623 = vadd.f32 %v245, %v622
      %v624 = vpop.f32.mrb[0].mxu0
      %v625 = vpop.f32.mrb[0].mxu0
      %v626 = vadd.f32 %v245, %v625
      %v627 = vpop.f32.mrb[0].mxu0
      %628 = vmatprep.mubr.bf16.mxu0 0
      %629 = vmatmul.mubr.bf16.gmra.mrb[0].mxu0 %v442
      %v630 = vpop.f32.mrb[0].mxu0
      %v631 = vadd.f32 %v245, %v630
      %v632 = vpop.f32.mrb[0].mxu0
      %v633 = vpop.f32.mrb[0].mxu0
      %v634 = vadd.f32 %v245, %v633
      %v635 = vpop.f32.mrb[0].mxu0
      %636 = vmatprep.mubr.bf16.mxu0 0
      %637 = vmatmul.mubr.bf16.gmra.mrb[0].mxu0 %v445
      %v638 = vpop.f32.mrb[0].mxu0
      %v639 = vadd.f32 %v245, %v638
      %v640 = vpop.f32.mrb[0].mxu0
      %v641 = vpop.f32.mrb[0].mxu0
      %v642 = vadd.f32 %v245, %v641
      %v643 = vpop.f32.mrb[0].mxu0
      %644 = vmatprep.mubr.bf16.mxu0 0
      %645 = vmatmul.mubr.bf16.gmra.mrb[0].mxu0 %v448
      %v646 = vpop.f32.mrb[0].mxu0
      %v647 = vadd.f32 %v245, %v646
      %v648 = vpop.f32.mrb[0].mxu0
      %v649 = vpop.f32.mrb[0].mxu0
      %v650 = vadd.f32 %v245, %v649
      %v651 = vpop.f32.mrb[0].mxu0
      %652 = vmatprep.mubr.bf16.mxu0 0
      %653 = vmatmul.mubr.bf16.gmra.mrb[0].mxu0 %v451
      %v654 = vpop.f32.mrb[0].mxu0
      %v655 = vadd.f32 %v245, %v654
      %v656 = vpop.f32.mrb[0].mxu0
      %v657 = vpop.f32.mrb[0].mxu0
      %v658 = vadd.f32 %v245, %v657
      %v659 = vpop.f32.mrb[0].mxu0
      %660 = vmatprep.mubr.bf16.mxu0 0
      %661 = vmatmul.mubr.bf16.gmra.mrb[0].mxu0 %v454
      %v662 = vpop.f32.mrb[0].mxu0
      %v663 = vadd.f32 %v245, %v662
      %v664 = vpop.f32.mrb[0].mxu0
      %v665 = vpop.f32.mrb[0].mxu0
      %v666 = vadd.f32 %v245, %v665
      %v667 = vpop.f32.mrb[0].mxu0
      %668 = vmatprep.mubr.bf16.mxu0 0
      %669 = vmatmul.mubr.bf16.gmra.mrb[0].mxu0 %v457
      %v670 = vpop.f32.mrb[0].mxu0
      %v671 = vadd.f32 %v245, %v670
      %v672 = vpop.f32.mrb[0].mxu0
      %v673 = vpop.f32.mrb[0].mxu0
      %v674 = vadd.f32 %v245, %v673
      %v675 = vpop.f32.mrb[0].mxu0
      %676 = vmatprep.mubr.bf16.mxu0 0
      %677 = vmatmul.mubr.bf16.gmra.mrb[0].mxu0 %v460
      %v678 = vpop.f32.mrb[0].mxu0
      %v679 = vadd.f32 %v245, %v678
      %v680 = vpop.f32.mrb[0].mxu0
      %v681 = vpop.f32.mrb[0].mxu0
      %v682 = vadd.f32 %v245, %v681
      %v683 = vpop.f32.mrb[0].mxu0
      %684 = vmatprep.mubr.bf16.mxu0 0
      %685 = vmatmul.mubr.bf16.gmra.mrb[0].mxu0 %v463
      %v686 = vpop.f32.mrb[0].mxu0
      %v687 = vadd.f32 %v245, %v686
      %v688 = vpop.f32.mrb[0].mxu0
      %v689 = vpop.f32.mrb[0].mxu0
      %v690 = vadd.f32 %v245, %v689
      %v691 = vpop.f32.mrb[0].mxu0
      %692 = vmatprep.mubr.bf16.mxu0 0
      %693 = vmatmul.mubr.bf16.gmra.mrb[0].mxu0 %v466
      %v694 = vpop.f32.mrb[0].mxu0
      %v695 = vadd.f32 %v245, %v694
      %v696 = vpop.f32.mrb[0].mxu0
      %v697 = vpop.f32.mrb[0].mxu0
      %v698 = vadd.f32 %v245, %v697
      %v699 = vpop.f32.mrb[0].mxu0
      %700 = vmatprep.mubr.bf16.mxu0 0
      %701 = vmatmul.mubr.bf16.gmra.mrb[0].mxu0 %v469
      %v702 = vpop.f32.mrb[0].mxu0
      %v703 = vadd.f32 %v245, %v702
      %v704 = vpop.f32.mrb[0].mxu0
      %v705 = vpop.f32.mrb[0].mxu0
      %v706 = vadd.f32 %v245, %v705
      %v707 = vpop.f32.mrb[0].mxu0
      %708 = vmatprep.mubr.bf16.mxu0 0
      %709 = vmatmul.mubr.bf16.gmra.mrb[0].mxu0 %v472
      %v710 = vpop.f32.mrb[0].mxu0
      %v711 = vadd.f32 %v245, %v710
      %v712 = vpop.f32.mrb[0].mxu0
      %v713 = vpop.f32.mrb[0].mxu0
      %v714 = vadd.f32 %v245, %v713
      %v715 = vpop.f32.mrb[0].mxu0
      %716 = vmatprep.mubr.bf16.mxu0 0
      %717 = vmatmul.mubr.bf16.gmra.mrb[0].mxu0 %v475
      %v718 = vpop.f32.mrb[0].mxu0
      %v719 = vadd.f32 %v245, %v718
      %v720 = vpop.f32.mrb[0].mxu0
      %v721 = vpop.f32.mrb[0].mxu0
      %v722 = vadd.f32 %v245, %v721
      %v723 = vpop.f32.mrb[0].mxu0
      %724 = vmatprep.mubr.bf16.mxu0 0
      %725 = vmatmul.mubr.bf16.gmra.mrb[0].mxu0 %v478
      %v726 = vpop.f32.mrb[0].mxu0
      %v727 = vadd.f32 %v245, %v726
      %v728 = vpop.f32.mrb[0].mxu0
      %v729 = vpop.f32.mrb[0].mxu0
      %v730 = vadd.f32 %v245, %v729
      %v731 = vpop.f32.mrb[0].mxu0
      %732 = vmatprep.mubr.bf16.mxu0 0
      %733 = vmatmul.mubr.bf16.gmra.mrb[0].mxu0 %v481
      %v734 = vpop.f32.mrb[0].mxu0
      %v735 = vadd.f32 %v245, %v734
      %v736 = vpop.f32.mrb[0].mxu0
      %v737 = vpop.f32.mrb[0].mxu0
      %v738 = vadd.f32 %v245, %v737
      %v739 = vpop.f32.mrb[0].mxu0
      %740 = vmatprep.mubr.bf16.mxu0 0
      %741 = vmatmul.mubr.bf16.gmra.mrb[0].mxu0 %v484
      %v742 = vpop.f32.mrb[0].mxu0
      %v743 = vadd.f32 %v245, %v742
      %v744 = vpop.f32.mrb[0].mxu0
      %v745 = vpop.f32.mrb[0].mxu0
      %v746 = vadd.f32 %v245, %v745
      %v747 = vpop.f32.mrb[0].mxu0
      %748 = vmatprep.mubr.bf16.mxu0 0
      %749 = vmatmul.mubr.bf16.gmra.mrb[0].mxu0 %v487
      %v750 = vpop.f32.mrb[0].mxu0
      %v751 = vadd.f32 %v245, %v750
      %v752 = vpop.f32.mrb[0].mxu0
      %v753 = vpop.f32.mrb[0].mxu0
      %v754 = vadd.f32 %v245, %v753
      %v755 = vpop.f32.mrb[0].mxu0
      %756 = vmatprep.mubr.bf16.mxu0 0
      %757 = vmatmul.mubr.bf16.gmra.mrb[0].mxu0 %v490
      %v758 = vpop.f32.mrb[0].mxu0
      %v759 = vadd.f32 %v245, %v758
      %v760 = vpop.f32.mrb[0].mxu0
      %v761 = vpop.f32.mrb[0].mxu0
      %v762 = vadd.f32 %v245, %v761
      %v763 = vpop.f32.mrb[0].mxu0
      %764 = vmatprep.mubr.bf16.mxu0 0
      %765 = vmatmul.mubr.bf16.gmra.mrb[0].mxu0 %v493
      %v766 = vpop.f32.mrb[0].mxu0
      %v767 = vadd.f32 %v245, %v766
      %v768 = vpop.f32.mrb[0].mxu0
      %v769 = vpop.f32.mrb[0].mxu0
      %v770 = vadd.f32 %v245, %v769
      %v771 = vpop.f32.mrb[0].mxu0
      %772 = vmatprep.mubr.bf16.mxu0 0
      %773 = vmatmul.mubr.bf16.gmra.mrb[0].mxu0 %v496
      %v774 = vpop.f32.mrb[0].mxu0
      %v775 = vadd.f32 %v245, %v774
      %v776 = vpop.f32.mrb[0].mxu0
      %v777 = vpop.f32.mrb[0].mxu0
      %v778 = vadd.f32 %v245, %v777
      %v779 = vpop.f32.mrb[0].mxu0
      %780 = vmatprep.mubr.bf16.mxu0 0
      %781 = vmatmul.mubr.bf16.gmra.mrb[0].mxu0 %v499
      %v782 = vpop.f32.mrb[0].mxu0
      %v783 = vadd.f32 %v245, %v782
      %v784 = vpop.f32.mrb[0].mxu0
      %v785 = vpop.f32.mrb[0].mxu0
      %v786 = vadd.f32 %v245, %v785
      %v787 = vpop.f32.mrb[0].mxu0
      %788 = vmatprep.mubr.bf16.mxu0 0
      %789 = vmatmul.mubr.bf16.gmra.mrb[0].mxu0 %v502
      %v790 = vpop.f32.mrb[0].mxu0
      %v791 = vadd.f32 %v245, %v790
      %v792 = vpop.f32.mrb[0].mxu0
      %v793 = vpop.f32.mrb[0].mxu0
      %v794 = vadd.f32 %v245, %v793
      %v795 = vpop.f32.mrb[0].mxu0
      %796 = vdwg.mxu0
      %797 = vst [vmem:[%s172] sm:$0xff] %v543
      %798 = vst [vmem:[%s172 + $0x8] sm:$0xff] %v546
      %799 = vst [vmem:[%s172 + $0x10] sm:$0xff] %v551
      %800 = vst [vmem:[%s172 + $0x18] sm:$0xff] %v554
      %801 = vst [vmem:[%s172 + $0x20] sm:$0xff] %v559
      %802 = vst [vmem:[%s172 + $0x28] sm:$0xff] %v562
      %803 = vst [vmem:[%s172 + $0x30] sm:$0xff] %v567
      %804 = vst [vmem:[%s172 + $0x38] sm:$0xff] %v570
      %805 = vst [vmem:[%s172 + $0x40] sm:$0xff] %v575
      %806 = vst [vmem:[%s172 + $0x48] sm:$0xff] %v578
      %807 = vst [vmem:[%s172 + $0x50] sm:$0xff] %v583
      %808 = vst [vmem:[%s172 + $0x58] sm:$0xff] %v586
      %809 = vst [vmem:[%s172 + $0x60] sm:$0xff] %v591
      %810 = vst [vmem:[%s172 + $0x68] sm:$0xff] %v594
      %811 = vst [vmem:[%s172 + $0x70] sm:$0xff] %v599
      %812 = vst [vmem:[%s172 + $0x78] sm:$0xff] %v602
      %813 = vst [vmem:[%s172 + $0x80] sm:$0xff] %v607
      %814 = vst [vmem:[%s172 + $0x88] sm:$0xff] %v610
      %815 = vst [vmem:[%s172 + $0x90] sm:$0xff] %v615
      %816 = vst [vmem:[%s172 + $0x98] sm:$0xff] %v618
      %817 = vst [vmem:[%s172 + $0xa0] sm:$0xff] %v623
      %818 = vst [vmem:[%s172 + $0xa8] sm:$0xff] %v626
      %819 = vst [vmem:[%s172 + $0xb0] sm:$0xff] %v631
      %820 = vst [vmem:[%s172 + $0xb8] sm:$0xff] %v634
      %821 = vst [vmem:[%s172 + $0xc0] sm:$0xff] %v639
      %822 = vst [vmem:[%s172 + $0xc8] sm:$0xff] %v642
      %823 = vst [vmem:[%s172 + $0xd0] sm:$0xff] %v647
      %824 = vst [vmem:[%s172 + $0xd8] sm:$0xff] %v650
      %825 = vst [vmem:[%s172 + $0xe0] sm:$0xff] %v655
      %826 = vst [vmem:[%s172 + $0xe8] sm:$0xff] %v658
      %827 = vst [vmem:[%s172 + $0xf0] sm:$0xff] %v663
      %828 = vst [vmem:[%s172 + $0xf8] sm:$0xff] %v666
      %829 = vst [vmem:[%s172 + $0x100] sm:$0xff] %v671
      %830 = vst [vmem:[%s172 + $0x108] sm:$0xff] %v674
      %831 = vst [vmem:[%s172 + $0x110] sm:$0xff] %v679
      %832 = vst [vmem:[%s172 + $0x118] sm:$0xff] %v682
      %833 = vst [vmem:[%s172 + $0x120] sm:$0xff] %v687
      %834 = vst [vmem:[%s172 + $0x128] sm:$0xff] %v690
      %835 = vst [vmem:[%s172 + $0x130] sm:$0xff] %v695
      %836 = vst [vmem:[%s172 + $0x138] sm:$0xff] %v698
      %837 = vst [vmem:[%s172 + $0x140] sm:$0xff] %v703
      %838 = vst [vmem:[%s172 + $0x148] sm:$0xff] %v706
      %839 = vst [vmem:[%s172 + $0x150] sm:$0xff] %v711
      %840 = vst [vmem:[%s172 + $0x158] sm:$0xff] %v714
      %841 = vst [vmem:[%s172 + $0x160] sm:$0xff] %v719
      %842 = vst [vmem:[%s172 + $0x168] sm:$0xff] %v722
      %843 = vst [vmem:[%s172 + $0x170] sm:$0xff] %v727
      %844 = vst [vmem:[%s172 + $0x178] sm:$0xff] %v730
      %845 = vst [vmem:[%s172 + $0x180] sm:$0xff] %v735
      %846 = vst [vmem:[%s172 + $0x188] sm:$0xff] %v738
      %847 = vst [vmem:[%s172 + $0x190] sm:$0xff] %v743
      %848 = vst [vmem:[%s172 + $0x198] sm:$0xff] %v746
      %849 = vst [vmem:[%s172 + $0x1a0] sm:$0xff] %v751
      %850 = vst [vmem:[%s172 + $0x1a8] sm:$0xff] %v754
      %851 = vst [vmem:[%s172 + $0x1b0] sm:$0xff] %v759
      %852 = vst [vmem:[%s172 + $0x1b8] sm:$0xff] %v762
      %853 = vst [vmem:[%s172 + $0x1c0] sm:$0xff] %v767
      %854 = vst [vmem:[%s172 + $0x1c8] sm:$0xff] %v770
      %855 = vst [vmem:[%s172 + $0x1d0] sm:$0xff] %v775
      %856 = vst [vmem:[%s172 + $0x1d8] sm:$0xff] %v778
      %857 = vst [vmem:[%s172 + $0x1e0] sm:$0xff] %v783
      %858 = vst [vmem:[%s172 + $0x1e8] sm:$0xff] %v786
      %859 = vst [vmem:[%s172 + $0x1f0] sm:$0xff] %v791
      %860 = vst [vmem:[%s172 + $0x1f8] sm:$0xff] %v794
      %s861 = smul.u32 64, %s14
      %p862 = scmp.lt.s32.totalorder %s861, 255
      %s863 = scalar_select %p862, %s861, 255
      %s864 = smul.addr %s863, 8
      %s865 = scalar_lea.vmem %s3, %s864
      // Predicated region
      $region33: #{decoder_img_forward.11} parent=31 // pred_check
        %p866 = pneg %p100
      $region34: #{decoder_img_forward.11} parent=31 // pred_check_branch
        %868 = sbr.rel (%p866) target = $region36
      $region35: #{decoder_img_forward.11} parent=31 // pred_region
        %s869 = smul.u32 64, %s14
      $region36: #{decoder_img_forward.11} parent=31 // pred_fallthru
        _
    $region32: #{decoder_img_forward.11} parent=5 // pred_fallthru
      _
    %p870 = scmp.le.s32.totalorder 2, %s9
    // Predicated region
    $region37: #{decoder_img_forward.11} parent=5 // pred_check
      %p871 = pneg %p870
    $region38: #{decoder_img_forward.11} parent=5 // pred_check_branch
      %873 = sbr.rel (%p871) target = $region40
    $region39: #{decoder_img_forward.11} parent=5 // pred_region
      %s874 = ssub.s32 %s9, 2
      // Predicated region
      $region41: #{decoder_img_forward.11} parent=39 // pred_check
        %p875 = pneg %p106
      $region42: #{decoder_img_forward.11} parent=39 // pred_check_branch
        %877 = sbr.rel (%p875) target = $region44
      $region43: #{decoder_img_forward.11} parent=39 // pred_region
        %s878 = smul.u32 64, %s15
        %p879 = scmp.lt.s32.totalorder %s878, 255
        %s880 = scalar_select %p879, %s878, 255
        %s881 = smul.addr %s880, 8
        %s882 = scalar_lea.vmem %s3, %s881
      $region44: #{decoder_img_forward.11} parent=39 // pred_fallthru
        _
    $region40: #{decoder_img_forward.11} parent=5 // pred_fallthru
      _
  $region6: #{decoder_img_forward.11} parent=0 // loop_footer
    %s13 = sadd.s32 1, %s9
  $region7: #{decoder_img_forward.11} parent=0 // loop_footer_branch
    %8 = sbr.rel target = $region3
  $region8: #{decoder_img_forward.11} parent=0 // loop_exit
    _

</llo_original>
